<compile_context>
chip_gen: v6e
topology: v6e:2x2x1
jax: 0.10.0
libtpu: 0.0.40
codegen_flags: <defaults>
</compile_context>

<pallas_src>
import jax
import jax.numpy as jnp
from jax.experimental import pallas as pl
from jax.experimental.pallas import tpu as pltpu

# ---- logical dimensions (match the PyTorch module defaults) -----------------
BERT_DIM = 768            # DistilBERT hidden size (cls token)
IMG_DIM = 1000            # img_dim
REP_DIM = 500             # rep_dim
ACT_DIM = 4               # action width (1268 + 4 - 768 - 500 = 4)
TEXT_DIM = BERT_DIM + REP_DIM + ACT_DIM   # 1272
HIDDEN_DIM = 200          # hidden_dim
OUT_DIM = 4               # output_dim

# ---- TPU-friendly padded dimensions ------------------------------------------
REP_PAD = 512             # 500 -> 512   (lane aligned)
HID_PAD = 256             # 200 -> 256
OUT_PAD = 128             # 4   -> 128   (lane-dense unmasked stores)
ACT_PAD = 8               # 4   -> 8     (sublane-aligned K for the tiny matmul)


def _round_up(x, m):
    return ((x + m - 1) // m) * m


def _pad_to(x, shape):
    return jnp.pad(x, [(0, t - s) for s, t in zip(x.shape, shape)])


# ------------------------------ kernel ----------------------------------------
def basic_kernel(img_ref, act_ref, wimg_ref, w1i_ref, w1a_ref, b1_ref,
                 w2_ref, b2_ref, out_ref):
    # image_main Linear(img_dim -> rep_dim); bias folded into b1_eff.
    # bf16 MXU inputs, f32 accumulation; K=1000 left unpadded (Mosaic masks it).
    img_rep = jnp.dot(img_ref[...].astype(jnp.bfloat16), wimg_ref[...],
                      preferred_element_type=jnp.float32)

    # main[0]: Linear(text_dim -> hidden_dim) on concat([text, img_rep, action]):
    #   - text term and b_img term are batch-invariant, pre-folded into b1_ref
    #   - img_rep block on the MXU (bf16 inputs, f32 accumulation)
    #   - action block as a tiny f32 (tile_b,8)x(8,256) MXU matmul (replaces the
    #     old 4-step broadcast-FMA loop on the VPU)
    h = (jnp.dot(img_rep.astype(jnp.bfloat16), w1i_ref[...],
                 preferred_element_type=jnp.float32)
         + jnp.dot(act_ref[...], w1a_ref[...],
                   preferred_element_type=jnp.float32)
         + b1_ref[...])

    # main[1]: ReLU ; main[2]: Linear(hidden -> output), bf16 MXU path,
    # lane-dense (padded-to-128) f32 output.
    h = jnp.maximum(h, 0.0).astype(jnp.bfloat16)
    out_ref[...] = (jnp.dot(h, w2_ref[...], preferred_element_type=jnp.float32)
                    + b2_ref[...]).astype(out_ref.dtype)


# ------------------------------ wrappers ---------------------------------------
def prepare_params(params):
    """One-time pad/cast of the weights to TPU-friendly layouts.

    Call once and reuse the result; avoids re-padding/casting ~1.5 MB of weights
    as traced XLA ops on every forward call."""
    return {
        "w_img": _pad_to(params["w_img"], (IMG_DIM, REP_PAD)).astype(jnp.bfloat16),
        "w1_img": _pad_to(params["w1_img"], (REP_PAD, HID_PAD)).astype(jnp.bfloat16),
        "w1_act": _pad_to(params["w1_act"], (ACT_PAD, HID_PAD)),     # f32 (tiny; keeps action exact)
        "w2": _pad_to(params["w2"], (HID_PAD, OUT_PAD)).astype(jnp.bfloat16),
        "b2": _pad_to(params["b2"], (1, OUT_PAD)),
        "w1_text": params["w1_text"],                                # used by the per-call text fold
        # batch-invariant bias pieces: b1 + b_img @ W1[img block]  (exact fold)
        "b1_base": params["b1"] + params["b_img"] @ params["w1_img"],
    }


def _choose_tile(batch, requested):
    tile = min(requested, _round_up(max(batch, 1), 8))
    if batch >= 16:
        # keep >= 2 grid steps so the parallel batch axis can shard across both
        # TensorCores on v7x (harmless on single-TC v5e/v6e).
        tile = min(tile, _round_up(-(-batch // 2), 8))
    return tile


def basic_forward(text_emb, image_embedding, action, prepped, *, tile_b=512):
    """text_emb: (1, 768) BERT cls embedding; image_embedding: (B, 1000) in f32
    or bf16 (streamed unpadded, cast in-kernel); action: (B, 4).
    `prepped` comes from prepare_params(). Returns (B, 4) float32."""
    B = image_embedding.shape[0]
    tile_b = _choose_tile(B, tile_b)
    B_pad = _round_up(B, tile_b)
    grid = (B_pad // tile_b,)

    # Fold the batch-invariant text contribution into the first-layer bias
    # (a tiny 1x768x200 GEMM in plain XLA per call).
    b1_eff = _pad_to(text_emb @ prepped["w1_text"] + prepped["b1_base"],
                     (1, HID_PAD))

    # Only a cheap batch-dim pad when B isn't a tile multiple; the big image
    # tensor is otherwise passed straight through (no pad/cast pre-pass).
    img = image_embedding
    if B_pad != B:
        img = jnp.pad(img, ((0, B_pad - B), (0, 0)))
    act = _pad_to(action.astype(jnp.float32), (B_pad, ACT_PAD))

    row = lambda i: (i, 0)       # stream over batch tiles
    const = lambda i: (0, 0)     # weights/biases stay VMEM-resident

    weights = (prepped["w_img"], prepped["w1_img"], prepped["w1_act"],
               b1_eff, prepped["w2"], prepped["b2"])
    flops = 2 * B_pad * (IMG_DIM * REP_PAD + REP_PAD * HID_PAD
                         + ACT_PAD * HID_PAD + HID_PAD * OUT_PAD)
    bytes_accessed = (img.size * img.dtype.itemsize
                      + act.size * act.dtype.itemsize
                      + sum(w.size * w.dtype.itemsize for w in weights)
                      + B_pad * OUT_PAD * 4)

    out = pl.pallas_call(
        basic_kernel,
        out_shape=jax.ShapeDtypeStruct((B_pad, OUT_PAD), jnp.float32),
        grid=grid,
        in_specs=[
            pl.BlockSpec((tile_b, IMG_DIM), row),     # image tile (unpadded lanes)
            pl.BlockSpec((tile_b, ACT_PAD), row),     # action tile
            pl.BlockSpec((IMG_DIM, REP_PAD), const),  # W_img (bf16)
            pl.BlockSpec((REP_PAD, HID_PAD), const),  # W1[img block] (bf16)
            pl.BlockSpec((ACT_PAD, HID_PAD), const),  # W1[action block] (f32)
            pl.BlockSpec((1, HID_PAD), const),        # b1_eff (text + b_img folded in)
            pl.BlockSpec((HID_PAD, OUT_PAD), const),  # W2 (bf16)
            pl.BlockSpec((1, OUT_PAD), const),        # b2
        ],
        out_specs=pl.BlockSpec((tile_b, OUT_PAD), row),
        compiler_params=pltpu.CompilerParams(
            dimension_semantics=("parallel",)),       # shard batch tiles across v7x's 2 TCs
        cost_estimate=pl.CostEstimate(
            flops=int(flops), transcendentals=0,
            bytes_accessed=int(bytes_accessed)),
    )(img, act, prepped["w_img"], prepped["w1_img"], prepped["w1_act"],
      b1_eff, prepped["w2"], prepped["b2"])

    return out[:B, :OUT_DIM]


# ------------------------------ init & reference -------------------------------
def init_params(key):
    """Deterministic PyTorch-Linear-style init (uniform +/- 1/sqrt(fan_in))."""
    ks = jax.random.split(key, 6)

    def lin(kw, kb, fan_in, fan_out):
        bound = 1.0 / jnp.sqrt(jnp.float32(fan_in))
        w = jax.random.uniform(kw, (fan_in, fan_out), jnp.float32, -bound, bound)
        b = jax.random.uniform(kb, (1, fan_out), jnp.float32, -bound, bound)
        return w, b

    w_img, b_img = lin(ks[0], ks[1], IMG_DIM, REP_DIM)     # image_main Linear
    w1, b1 = lin(ks[2], ks[3], TEXT_DIM, HIDDEN_DIM)       # main[0] Linear
    w2, b2 = lin(ks[4], ks[5], HIDDEN_DIM, OUT_DIM)        # main[2] Linear

    return {
        "w_img": w_img, "b_img": b_img,
        # split main[0] weight along the concat axis
        "w1_text": w1[:BERT_DIM],
        "w1_img": w1[BERT_DIM:BERT_DIM + REP_DIM],
        "w1_act": w1[BERT_DIM + REP_DIM:],
        "b1": b1,
        "w2": w2, "b2": b2,
    }


def _bf16(x):
    # mirror the kernel's bf16 MXU-input quantization in the reference
    return x.astype(jnp.bfloat16).astype(jnp.float32)


def reference_forward(text_emb, image_embedding, action, params):
    """Plain-JAX reference mirroring the PyTorch forward (concat then MLP).
    bf16 roundings are placed exactly where the kernel's MXU-input casts are,
    so the comparison isolates structural (tiling/padding/folding) correctness."""
    B = image_embedding.shape[0]
    img_mm = _bf16(image_embedding) @ _bf16(params["w_img"])   # image_main (bias folded below)
    text_b = jnp.broadcast_to(text_emb, (B, BERT_DIM))
    con = jnp.concatenate([text_b, _bf16(img_mm), action], axis=1)
    w1 = jnp.concatenate(
        [params["w1_text"], _bf16(params["w1_img"]), params["w1_act"]], axis=0)
    b1_eff = params["b1"] + params["b_img"] @ params["w1_img"]  # same fold as the kernel
    h = jnp.maximum(con @ w1 + b1_eff, 0.0)
    return _bf16(h) @ _bf16(params["w2"]) + params["b2"]


if __name__ == "__main__":
    key = jax.random.PRNGKey(0)
    k_params, k_text, k_data = jax.random.split(key, 3)

    params = init_params(k_params)
    prepped = prepare_params(params)
    text_emb = jax.random.normal(k_text, (1, BERT_DIM), jnp.float32)  # bert cls token

    # small primary case (B=2) plus a multi-tile / padded-batch case (B=300)
    for B in (2, 300):
        k_img, k_act = jax.random.split(jax.random.fold_in(k_data, B))
        image_embedding = jax.random.normal(k_img, (B, IMG_DIM), jnp.float32)  # resnet-style logits
        action = jax.random.normal(k_act, (B, ACT_DIM), jnp.float32)

        out = jax.block_until_ready(
            basic_forward(text_emb, image_embedding, action, prepped))
        ref = reference_forward(text_emb, image_embedding, action, params)

        assert out.shape == (B, OUT_DIM)
        err = float(jnp.max(jnp.abs(out - ref)))
        assert jnp.allclose(out, ref, atol=2e-3, rtol=2e-3), err

    print("KERNEL_OK")
</pallas_src>

<mosaic_0001>
module attributes {stable_mosaic.version = 11 : i64} {
  func.func @basic_kernel(%arg0: i32, %arg1: memref<8x1000xf32, #tpu.memory_space<vmem>>, %arg2: memref<8x8xf32, #tpu.memory_space<vmem>>, %arg3: memref<1000x512xbf16, #tpu.memory_space<vmem>>, %arg4: memref<512x256xbf16, #tpu.memory_space<vmem>>, %arg5: memref<8x256xf32, #tpu.memory_space<vmem>>, %arg6: memref<1x256xf32, #tpu.memory_space<vmem>>, %arg7: memref<256x128xbf16, #tpu.memory_space<vmem>>, %arg8: memref<1x128xf32, #tpu.memory_space<vmem>>, %arg9: memref<8x128xf32, #tpu.memory_space<vmem>>) attributes {dimension_semantics = [#tpu.dimension_semantics<parallel>], iteration_bounds = array<i64: 1>, scalar_prefetch = 0 : i64, scratch_operands = 0 : i64, tpu.core_type = #tpu.core_type<tc>, window_params = [{transform_indices = @transform_0, window_bounds = array<i64: 8, 1000>}, {transform_indices = @transform_1, window_bounds = array<i64: 8, 8>}, {pipeline_mode = #tpu.pipeline_mode<synchronous>, transform_indices = @transform_2, window_bounds = array<i64: 1000, 512>}, {pipeline_mode = #tpu.pipeline_mode<synchronous>, transform_indices = @transform_3, window_bounds = array<i64: 512, 256>}, {pipeline_mode = #tpu.pipeline_mode<synchronous>, transform_indices = @transform_4, window_bounds = array<i64: 8, 256>}, {pipeline_mode = #tpu.pipeline_mode<synchronous>, transform_indices = @transform_5, window_bounds = array<i64: 1, 256>}, {pipeline_mode = #tpu.pipeline_mode<synchronous>, transform_indices = @transform_6, window_bounds = array<i64: 256, 128>}, {pipeline_mode = #tpu.pipeline_mode<synchronous>, transform_indices = @transform_7, window_bounds = array<i64: 1, 128>}, {transform_indices = @transform_8, window_bounds = array<i64: 8, 128>}]} {
    %c0 = arith.constant 0 : index
    %c0_0 = arith.constant 0 : index
    %0 = vector.load %arg1[%c0, %c0_0] : memref<8x1000xf32, #tpu.memory_space<vmem>>, vector<8x1000xf32>
    %1 = arith.truncf %0 : vector<8x1000xf32> to vector<8x1000xbf16>
    %c0_1 = arith.constant 0 : index
    %c0_2 = arith.constant 0 : index
    %2 = vector.load %arg3[%c0_1, %c0_2] : memref<1000x512xbf16, #tpu.memory_space<vmem>>, vector<1000x512xbf16>
    %cst = arith.constant dense<0.000000e+00> : vector<8x512xf32>
    %3 = tpu.matmul %1, %2, %cst {dimension_numbers = #tpu.dot_dimension_numbers<[1], [0], [0], [1], [0, 0, 1, 1], [], []>} : vector<8x1000xbf16>, vector<1000x512xbf16>, vector<8x512xf32> -> vector<8x512xf32>
    %4 = arith.truncf %3 : vector<8x512xf32> to vector<8x512xbf16>
    %c0_3 = arith.constant 0 : index
    %c0_4 = arith.constant 0 : index
    %5 = vector.load %arg4[%c0_3, %c0_4] : memref<512x256xbf16, #tpu.memory_space<vmem>>, vector<512x256xbf16>
    %cst_5 = arith.constant dense<0.000000e+00> : vector<8x256xf32>
    %6 = tpu.matmul %4, %5, %cst_5 {dimension_numbers = #tpu.dot_dimension_numbers<[1], [0], [0], [1], [0, 0, 1, 1], [], []>} : vector<8x512xbf16>, vector<512x256xbf16>, vector<8x256xf32> -> vector<8x256xf32>
    %c0_6 = arith.constant 0 : index
    %c0_7 = arith.constant 0 : index
    %7 = vector.load %arg2[%c0_6, %c0_7] : memref<8x8xf32, #tpu.memory_space<vmem>>, vector<8x8xf32>
    %c0_8 = arith.constant 0 : index
    %c0_9 = arith.constant 0 : index
    %8 = vector.load %arg5[%c0_8, %c0_9] : memref<8x256xf32, #tpu.memory_space<vmem>>, vector<8x256xf32>
    %cst_10 = arith.constant dense<0.000000e+00> : vector<8x256xf32>
    %9 = tpu.matmul %7, %8, %cst_10 {dimension_numbers = #tpu.dot_dimension_numbers<[1], [0], [0], [1], [0, 0, 1, 1], [], []>} : vector<8x8xf32>, vector<8x256xf32>, vector<8x256xf32> -> vector<8x256xf32>
    %10 = arith.addf %6, %9 : vector<8x256xf32>
    %c0_11 = arith.constant 0 : index
    %c0_12 = arith.constant 0 : index
    %11 = vector.load %arg6[%c0_11, %c0_12] : memref<1x256xf32, #tpu.memory_space<vmem>>, vector<1x256xf32>
    %12 = vector.broadcast %11 : vector<1x256xf32> to vector<8x256xf32>
    %13 = arith.addf %10, %12 : vector<8x256xf32>
    %cst_13 = arith.constant 0.000000e+00 : f32
    %14 = vector.broadcast %cst_13 : f32 to vector<8x256xf32>
    %15 = arith.maximumf %13, %14 : vector<8x256xf32>
    %16 = arith.truncf %15 : vector<8x256xf32> to vector<8x256xbf16>
    %c0_14 = arith.constant 0 : index
    %c0_15 = arith.constant 0 : index
    %17 = vector.load %arg7[%c0_14, %c0_15] : memref<256x128xbf16, #tpu.memory_space<vmem>>, vector<256x128xbf16>
    %cst_16 = arith.constant dense<0.000000e+00> : vector<8x128xf32>
    %18 = tpu.matmul %16, %17, %cst_16 {dimension_numbers = #tpu.dot_dimension_numbers<[1], [0], [0], [1], [0, 0, 1, 1], [], []>} : vector<8x256xbf16>, vector<256x128xbf16>, vector<8x128xf32> -> vector<8x128xf32>
    %c0_17 = arith.constant 0 : index
    %c0_18 = arith.constant 0 : index
    %19 = vector.load %arg8[%c0_17, %c0_18] : memref<1x128xf32, #tpu.memory_space<vmem>>, vector<1x128xf32>
    %20 = vector.broadcast %19 : vector<1x128xf32> to vector<8x128xf32>
    %21 = arith.addf %18, %20 : vector<8x128xf32>
    %c0_19 = arith.constant 0 : index
    %c0_20 = arith.constant 0 : index
    %22 = vector.load %arg9[%c0_19, %c0_20] : memref<8x128xf32, #tpu.memory_space<vmem>>, vector<8x128xf32>
    tpu.vector_store %arg9[%c0_19, %c0_20], %21 {strides = array<i32>} : memref<8x128xf32, #tpu.memory_space<vmem>>, vector<8x128xf32>,
    return
  }
  func.func @transform_0(%arg0: i32) -> (i32, i32) {
    %c0_i32 = arith.constant 0 : i32
    %c0_i32_0 = arith.constant 0 : i32
    return %arg0, %c0_i32 : i32, i32
  }
  func.func @transform_1(%arg0: i32) -> (i32, i32) {
    %c0_i32 = arith.constant 0 : i32
    %c0_i32_0 = arith.constant 0 : i32
    return %arg0, %c0_i32 : i32, i32
  }
  func.func @transform_2(%arg0: i32) -> (i32, i32) {
    %c0_i32 = arith.constant 0 : i32
    %c0_i32_0 = arith.constant 0 : i32
    %c0_i32_1 = arith.constant 0 : i32
    return %c0_i32, %c0_i32_0 : i32, i32
  }
  func.func @transform_3(%arg0: i32) -> (i32, i32) {
    %c0_i32 = arith.constant 0 : i32
    %c0_i32_0 = arith.constant 0 : i32
    %c0_i32_1 = arith.constant 0 : i32
    return %c0_i32, %c0_i32_0 : i32, i32
  }
  func.func @transform_4(%arg0: i32) -> (i32, i32) {
    %c0_i32 = arith.constant 0 : i32
    %c0_i32_0 = arith.constant 0 : i32
    %c0_i32_1 = arith.constant 0 : i32
    return %c0_i32, %c0_i32_0 : i32, i32
  }
  func.func @transform_5(%arg0: i32) -> (i32, i32) {
    %c0_i32 = arith.constant 0 : i32
    %c0_i32_0 = arith.constant 0 : i32
    %c0_i32_1 = arith.constant 0 : i32
    return %c0_i32, %c0_i32_0 : i32, i32
  }
  func.func @transform_6(%arg0: i32) -> (i32, i32) {
    %c0_i32 = arith.constant 0 : i32
    %c0_i32_0 = arith.constant 0 : i32
    %c0_i32_1 = arith.constant 0 : i32
    return %c0_i32, %c0_i32_0 : i32, i32
  }
  func.func @transform_7(%arg0: i32) -> (i32, i32) {
    %c0_i32 = arith.constant 0 : i32
    %c0_i32_0 = arith.constant 0 : i32
    %c0_i32_1 = arith.constant 0 : i32
    return %c0_i32, %c0_i32_0 : i32, i32
  }
  func.func @transform_8(%arg0: i32) -> (i32, i32) {
    %c0_i32 = arith.constant 0 : i32
    %c0_i32_0 = arith.constant 0 : i32
    return %arg0, %c0_i32 : i32, i32
  }
}

</mosaic_0001>

<llo_original>
// kernel: tpu_custom_call.1
$region0: #{tpu_custom_call.1}
  #allocation0 [shape = 'u32[]', space=smem, size = 0x4, offset = 0x4, fixed_abs, tag = 'smem constant byte address 0x4 - core index']
  #allocation1 [shape = 'u32[144,128]{1,0:T(1,128)}', space=vmem, size = 0x12000, scoped, tag = 'internal scratch']
  %s0 = inlined_call_operand.hbm [shape: f32[8,1000], index: 0, kind: input, shape index: {}]
  %s1 = inlined_call_operand.hbm [shape: f32[8,8], index: 1, kind: input, shape index: {}]
  %s2 = inlined_call_operand.hbm [shape: bf16[1000,512], index: 2, kind: input, shape index: {}]
  %s3 = inlined_call_operand.hbm [shape: bf16[512,256], index: 3, kind: input, shape index: {}]
  %s4 = inlined_call_operand.hbm [shape: f32[8,256], index: 4, kind: input, shape index: {}]
  %s5 = inlined_call_operand.vmem [shape: f32[1,256], index: 5, kind: input, shape index: {}]
  %s6 = inlined_call_operand.hbm [shape: bf16[256,128], index: 6, kind: input, shape index: {}]
  %s7 = inlined_call_operand.vmem [shape: f32[1,128], index: 7, kind: input, shape index: {}]
  %s8 = inlined_call_operand.hbm [shape: f32[8,128], index: 8, kind: output, shape index: {}]
  %s9 = sld [smem:[#allocation0]]
  $region66: #{tpu_custom_call.1} parent=0
    _
  %s11 = ssub.s32 1, %s9
  %s12 = scalar_select 0, %s11, %s9
  $region1: #{tpu_custom_call.1} parent=0
    #allocation2 [shape = 'u8[32768]{0}', space=vmem, size = 0x8000, scoped, tag = 'input window, operand 0, single buffered']
    #allocation3 [shape = 's32[1]{0}', space=sflag, size = 0x4, scoped, tag = 'scoped memory for tpu_custom_call.1']
    #allocation4 [shape = 's32[1]{0}', space=sflag, size = 0x4, scoped, tag = 'scoped memory for tpu_custom_call.1']
    #allocation5 [shape = 'u8[4096]{0}', space=vmem, size = 0x1000, scoped, tag = 'input window, operand 1, single buffered']
    #allocation6 [shape = 's32[1]{0}', space=sflag, size = 0x4, scoped, tag = 'scoped memory for tpu_custom_call.1']
    #allocation7 [shape = 'u8[1024000]{0}', space=vmem, size = 0xfa000, scoped, tag = 'input window, operand 2, single buffered']
    #allocation8 [shape = 'u8[262144]{0}', space=vmem, size = 0x40000, scoped, tag = 'input window, operand 3, single buffered']
    #allocation9 [shape = 's32[1]{0}', space=sflag, size = 0x4, scoped, tag = 'scoped memory for tpu_custom_call.1']
    #allocation10 [shape = 'u8[8192]{0}', space=vmem, size = 0x2000, scoped, tag = 'input window, operand 4, single buffered']
    #allocation11 [shape = 'u8[65536]{0}', space=vmem, size = 0x10000, scoped, tag = 'input window, operand 6, single buffered']
    #allocation12 [shape = 's32[1]{0}', space=sflag, size = 0x4, scoped, tag = 'scoped memory for tpu_custom_call.1']
    #allocation13 [shape = 'u8[4096]{0}', space=vmem, size = 0x1000, scoped, tag = 'output window, operand 0, single buffered']
    %13 = vsyncpa [#allocation3], 0
    %14 = vsyncpa [#allocation6], 0
    %15 = vsyncpa [#allocation9], 0
    %16 = vsyncpa [#allocation12], 0
    %17 = vsyncpa [#allocation4], 0
    // Predicated region
    $region2: #{tpu_custom_call.1} parent=1 // pred_check
      _
    $region3: #{tpu_custom_call.1} parent=1 // pred_check_branch
      %19 = sbr.rel (0) target = $region5
    $region4: #{tpu_custom_call.1} parent=1 // pred_region
      %s21 = ssub.s32 1024, 1024
      %22 = vsyncadd [#allocation3], %s21
      %s24 = sshll.u32 [#allocation2], 4
      %s25 = int_to_ptr.vmem [resolvable:$true] %s24
      %27 = dma.hbm_to_vmem [thread:$0]  %s0, 1024, %s25, [#allocation3]
    $region5: #{tpu_custom_call.1} parent=1 // pred_fallthru
      _
    // Predicated region
    $region6: #{tpu_custom_call.1} parent=1 // pred_check
      _
    $region7: #{tpu_custom_call.1} parent=1 // pred_check_branch
      %29 = sbr.rel (0) target = $region9
    $region8: #{tpu_custom_call.1} parent=1 // pred_region
      %s31 = ssub.s32 128, 128
      %32 = vsyncadd [#allocation6], %s31
      %s34 = sshll.u32 [#allocation5], 4
      %s35 = int_to_ptr.vmem [resolvable:$true] %s34
      %37 = dma.hbm_to_vmem [thread:$0]  %s1, 128, %s35, [#allocation6]
    $region9: #{tpu_custom_call.1} parent=1 // pred_fallthru
      _
    // Predicated region
    $region10: #{tpu_custom_call.1} parent=1 // pred_check
      _
    $region11: #{tpu_custom_call.1} parent=1 // pred_check_branch
      %39 = sbr.rel (0) target = $region13
    $region12: #{tpu_custom_call.1} parent=1 // pred_region
      %s41 = ssub.s32 32000, 32000
      %42 = vsyncadd [#allocation6], %s41
      %s43 = sshll.u32 [#allocation7], 4
      %s44 = int_to_ptr.vmem [resolvable:$true] %s43
      %49 = dma.hbm_to_vmem [thread:$0]  %s2, 32000, %s44, [#allocation6], 256, 256, 16
    $region13: #{tpu_custom_call.1} parent=1 // pred_fallthru
      _
    // Predicated region
    $region14: #{tpu_custom_call.1} parent=1 // pred_check
      _
    $region15: #{tpu_custom_call.1} parent=1 // pred_check_branch
      %51 = sbr.rel (0) target = $region17
    $region16: #{tpu_custom_call.1} parent=1 // pred_region
      %s53 = ssub.s32 8192, 8192
      %54 = vsyncadd [#allocation9], %s53
      %s55 = sshll.u32 [#allocation8], 4
      %s56 = int_to_ptr.vmem [resolvable:$true] %s55
      %61 = dma.hbm_to_vmem [thread:$0]  %s3, 8192, %s56, [#allocation9], 128, 128, 8
    $region17: #{tpu_custom_call.1} parent=1 // pred_fallthru
      _
    // Predicated region
    $region18: #{tpu_custom_call.1} parent=1 // pred_check
      _
    $region19: #{tpu_custom_call.1} parent=1 // pred_check_branch
      %63 = sbr.rel (0) target = $region21
    $region20: #{tpu_custom_call.1} parent=1 // pred_region
      %s65 = ssub.s32 256, 256
      %66 = vsyncadd [#allocation9], %s65
      %s68 = sshll.u32 [#allocation10], 4
      %s69 = int_to_ptr.vmem [resolvable:$true] %s68
      %71 = dma.hbm_to_vmem [thread:$0]  %s4, 256, %s69, [#allocation9]
    $region21: #{tpu_custom_call.1} parent=1 // pred_fallthru
      _
    // Predicated region
    $region22: #{tpu_custom_call.1} parent=1 // pred_check
      _
    $region23: #{tpu_custom_call.1} parent=1 // pred_check_branch
      %73 = sbr.rel (0) target = $region25
    $region24: #{tpu_custom_call.1} parent=1 // pred_region
      _
    $region25: #{tpu_custom_call.1} parent=1 // pred_fallthru
      _
    // Predicated region
    $region26: #{tpu_custom_call.1} parent=1 // pred_check
      _
    $region27: #{tpu_custom_call.1} parent=1 // pred_check_branch
      %75 = sbr.rel (0) target = $region29
    $region28: #{tpu_custom_call.1} parent=1 // pred_region
      %s77 = ssub.s32 2048, 2048
      %78 = vsyncadd [#allocation12], %s77
      %s79 = sshll.u32 [#allocation11], 4
      %s80 = int_to_ptr.vmem [resolvable:$true] %s79
      %85 = dma.hbm_to_vmem [thread:$0]  %s6, 2048, %s80, [#allocation12], 64, 64, 4
    $region29: #{tpu_custom_call.1} parent=1 // pred_fallthru
      _
    // Predicated region
    $region30: #{tpu_custom_call.1} parent=1 // pred_check
      _
    $region31: #{tpu_custom_call.1} parent=1 // pred_check_branch
      %87 = sbr.rel (0) target = $region33
    $region32: #{tpu_custom_call.1} parent=1 // pred_region
      _
    $region33: #{tpu_custom_call.1} parent=1 // pred_fallthru
      _
    // Predicated region
    $region34: #{tpu_custom_call.1} parent=1 // pred_check
      _
    $region35: #{tpu_custom_call.1} parent=1 // pred_check_branch
      %89 = sbr.rel (0) target = $region37
    $region36: #{tpu_custom_call.1} parent=1 // pred_region
      %90 = dma.done [#allocation3], 1024
    $region37: #{tpu_custom_call.1} parent=1 // pred_fallthru
      _
    // Predicated region
    $region38: #{tpu_custom_call.1} parent=1 // pred_check
      _
    $region39: #{tpu_custom_call.1} parent=1 // pred_check_branch
      %92 = sbr.rel (0) target = $region41
    $region40: #{tpu_custom_call.1} parent=1 // pred_region
      %93 = dma.done [#allocation6], 128
    $region41: #{tpu_custom_call.1} parent=1 // pred_fallthru
      _
    // Predicated region
    $region42: #{tpu_custom_call.1} parent=1 // pred_check
      _
    $region43: #{tpu_custom_call.1} parent=1 // pred_check_branch
      %95 = sbr.rel (0) target = $region45
    $region44: #{tpu_custom_call.1} parent=1 // pred_region
      %96 = dma.done [#allocation6], 32000
    $region45: #{tpu_custom_call.1} parent=1 // pred_fallthru
      _
    // Predicated region
    $region46: #{tpu_custom_call.1} parent=1 // pred_check
      _
    $region47: #{tpu_custom_call.1} parent=1 // pred_check_branch
      %98 = sbr.rel (0) target = $region49
    $region48: #{tpu_custom_call.1} parent=1 // pred_region
      %99 = dma.done [#allocation9], 8192
    $region49: #{tpu_custom_call.1} parent=1 // pred_fallthru
      _
    // Predicated region
    $region50: #{tpu_custom_call.1} parent=1 // pred_check
      _
    $region51: #{tpu_custom_call.1} parent=1 // pred_check_branch
      %101 = sbr.rel (0) target = $region53
    $region52: #{tpu_custom_call.1} parent=1 // pred_region
      %102 = dma.done [#allocation9], 256
    $region53: #{tpu_custom_call.1} parent=1 // pred_fallthru
      _
    // Predicated region
    $region54: #{tpu_custom_call.1} parent=1 // pred_check
      _
    $region55: #{tpu_custom_call.1} parent=1 // pred_check_branch
      %104 = sbr.rel (0) target = $region57
    $region56: #{tpu_custom_call.1} parent=1 // pred_region
      %105 = dma.done [#allocation12], 2048
    $region57: #{tpu_custom_call.1} parent=1 // pred_fallthru
      _
    %v107 = vld [vmem:[#allocation2] sm:$0xff]
    %v108 = vld [vmem:[#allocation2 + $0x8] sm:$0xff]
    %v109 = vld [vmem:[#allocation2 + $0x10] sm:$0xff]
    %v110 = vld [vmem:[#allocation2 + $0x18] sm:$0xff]
    %v111 = vld [vmem:[#allocation2 + $0x20] sm:$0xff]
    %v112 = vld [vmem:[#allocation2 + $0x28] sm:$0xff]
    %v113 = vld [vmem:[#allocation2 + $0x30] sm:$0xff]
    %v114 = vld [vmem:[#allocation2 + $0x38] sm:$0xff]
    %v115 = vpack.c.bf16 %v107, %v107
    %v116 = vpack.c.bf16 %v108, %v108
    %v117 = vpack.c.bf16 %v109, %v109
    %v118 = vpack.c.bf16 %v110, %v110
    %v119 = vpack.c.bf16 %v111, %v111
    %v120 = vpack.c.bf16 %v112, %v112
    %v121 = vpack.c.bf16 %v113, %v113
    %v122 = vpack.c.bf16 %v114, %v114
    %v123 = vld [vmem:[#allocation7] sm:$0xff]
    %v124 = vld [vmem:[#allocation7 + $0x8] sm:$0xff]
    %v125 = vld [vmem:[#allocation7 + $0x10] sm:$0xff]
    %v126 = vld [vmem:[#allocation7 + $0x18] sm:$0xff]
    %v127 = vld [vmem:[#allocation7 + $0x20] sm:$0xff]
    %v128 = vld [vmem:[#allocation7 + $0x28] sm:$0xff]
    %v129 = vld [vmem:[#allocation7 + $0x30] sm:$0xff]
    %v130 = vld [vmem:[#allocation7 + $0x38] sm:$0xff]
    %v131 = vld [vmem:[#allocation7 + $0x40] sm:$0xff]
    %v132 = vld [vmem:[#allocation7 + $0x48] sm:$0xff]
    %v133 = vld [vmem:[#allocation7 + $0x50] sm:$0xff]
    %v134 = vld [vmem:[#allocation7 + $0x58] sm:$0xff]
    %v135 = vld [vmem:[#allocation7 + $0x60] sm:$0xff]
    %v136 = vld [vmem:[#allocation7 + $0x68] sm:$0xff]
    %v137 = vld [vmem:[#allocation7 + $0x70] sm:$0xff]
    %v138 = vld [vmem:[#allocation7 + $0x78] sm:$0xff]
    %v139 = vld [vmem:[#allocation7 + $0x80] sm:$0xff]
    %v140 = vld [vmem:[#allocation7 + $0x88] sm:$0xff]
    %v141 = vld [vmem:[#allocation7 + $0x90] sm:$0xff]
    %v142 = vld [vmem:[#allocation7 + $0x98] sm:$0xff]
    %v143 = vld [vmem:[#allocation7 + $0xa0] sm:$0xff]
    %v144 = vld [vmem:[#allocation7 + $0xa8] sm:$0xff]
    %v145 = vld [vmem:[#allocation7 + $0xb0] sm:$0xff]
    %v146 = vld [vmem:[#allocation7 + $0xb8] sm:$0xff]
    %v147 = vld [vmem:[#allocation7 + $0xc0] sm:$0xff]
    %v148 = vld [vmem:[#allocation7 + $0xc8] sm:$0xff]
    %v149 = vld [vmem:[#allocation7 + $0xd0] sm:$0xff]
    %v150 = vld [vmem:[#allocation7 + $0xd8] sm:$0xff]
    %v151 = vld [vmem:[#allocation7 + $0xe0] sm:$0xff]
    %v152 = vld [vmem:[#allocation7 + $0xe8] sm:$0xff]
    %v153 = vld [vmem:[#allocation7 + $0xf0] sm:$0xff]
    %v154 = vld [vmem:[#allocation7 + $0xf8] sm:$0xff]
    %v155 = vld [vmem:[#allocation7 + $0x100] sm:$0xff]
    %v156 = vld [vmem:[#allocation7 + $0x108] sm:$0xff]
    %v157 = vld [vmem:[#allocation7 + $0x110] sm:$0xff]
    %v158 = vld [vmem:[#allocation7 + $0x118] sm:$0xff]
    %v159 = vld [vmem:[#allocation7 + $0x120] sm:$0xff]
    %v160 = vld [vmem:[#allocation7 + $0x128] sm:$0xff]
    %v161 = vld [vmem:[#allocation7 + $0x130] sm:$0xff]
    %v162 = vld [vmem:[#allocation7 + $0x138] sm:$0xff]
    %v163 = vld [vmem:[#allocation7 + $0x140] sm:$0xff]
    %v164 = vld [vmem:[#allocation7 + $0x148] sm:$0xff]
    %v165 = vld [vmem:[#allocation7 + $0x150] sm:$0xff]
    %v166 = vld [vmem:[#allocation7 + $0x158] sm:$0xff]
    %v167 = vld [vmem:[#allocation7 + $0x160] sm:$0xff]
    %v168 = vld [vmem:[#allocation7 + $0x168] sm:$0xff]
    %v169 = vld [vmem:[#allocation7 + $0x170] sm:$0xff]
    %v170 = vld [vmem:[#allocation7 + $0x178] sm:$0xff]
    %v171 = vld [vmem:[#allocation7 + $0x180] sm:$0xff]
    %v172 = vld [vmem:[#allocation7 + $0x188] sm:$0xff]
    %v173 = vld [vmem:[#allocation7 + $0x190] sm:$0xff]
    %v174 = vld [vmem:[#allocation7 + $0x198] sm:$0xff]
    %v175 = vld [vmem:[#allocation7 + $0x1a0] sm:$0xff]
    %v176 = vld [vmem:[#allocation7 + $0x1a8] sm:$0xff]
    %v177 = vld [vmem:[#allocation7 + $0x1b0] sm:$0xff]
    %v178 = vld [vmem:[#allocation7 + $0x1b8] sm:$0xff]
    %v179 = vld [vmem:[#allocation7 + $0x1c0] sm:$0xff]
    %v180 = vld [vmem:[#allocation7 + $0x1c8] sm:$0xff]
    %v181 = vld [vmem:[#allocation7 + $0x1d0] sm:$0xff]
    %v182 = vld [vmem:[#allocation7 + $0x1d8] sm:$0xff]
    %v183 = vld [vmem:[#allocation7 + $0x1e0] sm:$0xff]
    %v184 = vld [vmem:[#allocation7 + $0x1e8] sm:$0xff]
    %v185 = vld [vmem:[#allocation7 + $0x1f0] sm:$0xff]
    %v186 = vld [vmem:[#allocation7 + $0x1f8] sm:$0xff]
    %v187 = vld [vmem:[#allocation7 + $0x200] sm:$0xff]
    %v188 = vld [vmem:[#allocation7 + $0x208] sm:$0xff]
    %v189 = vld [vmem:[#allocation7 + $0x210] sm:$0xff]
    %v190 = vld [vmem:[#allocation7 + $0x218] sm:$0xff]
    %v191 = vld [vmem:[#allocation7 + $0x220] sm:$0xff]
    %v192 = vld [vmem:[#allocation7 + $0x228] sm:$0xff]
    %v193 = vld [vmem:[#allocation7 + $0x230] sm:$0xff]
    %v194 = vld [vmem:[#allocation7 + $0x238] sm:$0xff]
    %v195 = vld [vmem:[#allocation7 + $0x240] sm:$0xff]
    %v196 = vld [vmem:[#allocation7 + $0x248] sm:$0xff]
    %v197 = vld [vmem:[#allocation7 + $0x250] sm:$0xff]
    %v198 = vld [vmem:[#allocation7 + $0x258] sm:$0xff]
    %v199 = vld [vmem:[#allocation7 + $0x260] sm:$0xff]
    %v200 = vld [vmem:[#allocation7 + $0x268] sm:$0xff]
    %v201 = vld [vmem:[#allocation7 + $0x270] sm:$0xff]
    %v202 = vld [vmem:[#allocation7 + $0x278] sm:$0xff]
    %v203 = vld [vmem:[#allocation7 + $0x280] sm:$0xff]
    %v204 = vld [vmem:[#allocation7 + $0x288] sm:$0xff]
    %v205 = vld [vmem:[#allocation7 + $0x290] sm:$0xff]
    %v206 = vld [vmem:[#allocation7 + $0x298] sm:$0xff]
    %v207 = vld [vmem:[#allocation7 + $0x2a0] sm:$0xff]
    %v208 = vld [vmem:[#allocation7 + $0x2a8] sm:$0xff]
    %v209 = vld [vmem:[#allocation7 + $0x2b0] sm:$0xff]
    %v210 = vld [vmem:[#allocation7 + $0x2b8] sm:$0xff]
    %v211 = vld [vmem:[#allocation7 + $0x2c0] sm:$0xff]
    %v212 = vld [vmem:[#allocation7 + $0x2c8] sm:$0xff]
    %v213 = vld [vmem:[#allocation7 + $0x2d0] sm:$0xff]
    %v214 = vld [vmem:[#allocation7 + $0x2d8] sm:$0xff]
    %v215 = vld [vmem:[#allocation7 + $0x2e0] sm:$0xff]
    %v216 = vld [vmem:[#allocation7 + $0x2e8] sm:$0xff]
    %v217 = vld [vmem:[#allocation7 + $0x2f0] sm:$0xff]
    %v218 = vld [vmem:[#allocation7 + $0x2f8] sm:$0xff]
    %v219 = vld [vmem:[#allocation7 + $0x300] sm:$0xff]
    %v220 = vld [vmem:[#allocation7 + $0x308] sm:$0xff]
    %v221 = vld [vmem:[#allocation7 + $0x310] sm:$0xff]
    %v222 = vld [vmem:[#allocation7 + $0x318] sm:$0xff]
    %v223 = vld [vmem:[#allocation7 + $0x320] sm:$0xff]
    %v224 = vld [vmem:[#allocation7 + $0x328] sm:$0xff]
    %v225 = vld [vmem:[#allocation7 + $0x330] sm:$0xff]
    %v226 = vld [vmem:[#allocation7 + $0x338] sm:$0xff]
    %v227 = vld [vmem:[#allocation7 + $0x340] sm:$0xff]
    %v228 = vld [vmem:[#allocation7 + $0x348] sm:$0xff]
    %v229 = vld [vmem:[#allocation7 + $0x350] sm:$0xff]
    %v230 = vld [vmem:[#allocation7 + $0x358] sm:$0xff]
    %v231 = vld [vmem:[#allocation7 + $0x360] sm:$0xff]
    %v232 = vld [vmem:[#allocation7 + $0x368] sm:$0xff]
    %v233 = vld [vmem:[#allocation7 + $0x370] sm:$0xff]
    %v234 = vld [vmem:[#allocation7 + $0x378] sm:$0xff]
    %v235 = vld [vmem:[#allocation7 + $0x380] sm:$0xff]
    %v236 = vld [vmem:[#allocation7 + $0x388] sm:$0xff]
    %v237 = vld [vmem:[#allocation7 + $0x390] sm:$0xff]
    %v238 = vld [vmem:[#allocation7 + $0x398] sm:$0xff]
    %v239 = vld [vmem:[#allocation7 + $0x3a0] sm:$0xff]
    %v240 = vld [vmem:[#allocation7 + $0x3a8] sm:$0xff]
    %v241 = vld [vmem:[#allocation7 + $0x3b0] sm:$0xff]
    %v242 = vld [vmem:[#allocation7 + $0x3b8] sm:$0xff]
    %v243 = vld [vmem:[#allocation7 + $0x3c0] sm:$0xff]
    %v244 = vld [vmem:[#allocation7 + $0x3c8] sm:$0xff]
    %v245 = vld [vmem:[#allocation7 + $0x3d0] sm:$0xff]
    %v246 = vld [vmem:[#allocation7 + $0x3d8] sm:$0xff]
    %v247 = vld [vmem:[#allocation7 + $0x3e0] sm:$0xff]
    %v248 = vld [vmem:[#allocation7 + $0x3e8] sm:$0xff]
    %v249 = vld [vmem:[#allocation7 + $0x3f0] sm:$0xff]
    %v250 = vld [vmem:[#allocation7 + $0x3f8] sm:$0xff]
    %v251 = vld [vmem:[#allocation7 + $0x400] sm:$0xff]
    %v252 = vld [vmem:[#allocation7 + $0x408] sm:$0xff]
    %v253 = vld [vmem:[#allocation7 + $0x410] sm:$0xff]
    %v254 = vld [vmem:[#allocation7 + $0x418] sm:$0xff]
    %v255 = vld [vmem:[#allocation7 + $0x420] sm:$0xff]
    %v256 = vld [vmem:[#allocation7 + $0x428] sm:$0xff]
    %v257 = vld [vmem:[#allocation7 + $0x430] sm:$0xff]
    %v258 = vld [vmem:[#allocation7 + $0x438] sm:$0xff]
    %v259 = vld [vmem:[#allocation7 + $0x440] sm:$0xff]
    %v260 = vld [vmem:[#allocation7 + $0x448] sm:$0xff]
    %v261 = vld [vmem:[#allocation7 + $0x450] sm:$0xff]
    %v262 = vld [vmem:[#allocation7 + $0x458] sm:$0xff]
    %v263 = vld [vmem:[#allocation7 + $0x460] sm:$0xff]
    %v264 = vld [vmem:[#allocation7 + $0x468] sm:$0xff]
    %v265 = vld [vmem:[#allocation7 + $0x470] sm:$0xff]
    %v266 = vld [vmem:[#allocation7 + $0x478] sm:$0xff]
    %v267 = vld [vmem:[#allocation7 + $0x480] sm:$0xff]
    %v268 = vld [vmem:[#allocation7 + $0x488] sm:$0xff]
    %v269 = vld [vmem:[#allocation7 + $0x490] sm:$0xff]
    %v270 = vld [vmem:[#allocation7 + $0x498] sm:$0xff]
    %v271 = vld [vmem:[#allocation7 + $0x4a0] sm:$0xff]
    %v272 = vld [vmem:[#allocation7 + $0x4a8] sm:$0xff]
    %v273 = vld [vmem:[#allocation7 + $0x4b0] sm:$0xff]
    %v274 = vld [vmem:[#allocation7 + $0x4b8] sm:$0xff]
    %v275 = vld [vmem:[#allocation7 + $0x4c0] sm:$0xff]
    %v276 = vld [vmem:[#allocation7 + $0x4c8] sm:$0xff]
    %v277 = vld [vmem:[#allocation7 + $0x4d0] sm:$0xff]
    %v278 = vld [vmem:[#allocation7 + $0x4d8] sm:$0xff]
    %v279 = vld [vmem:[#allocation7 + $0x4e0] sm:$0xff]
    %v280 = vld [vmem:[#allocation7 + $0x4e8] sm:$0xff]
    %v281 = vld [vmem:[#allocation7 + $0x4f0] sm:$0xff]
    %v282 = vld [vmem:[#allocation7 + $0x4f8] sm:$0xff]
    %v283 = vld [vmem:[#allocation7 + $0x500] sm:$0xff]
    %v284 = vld [vmem:[#allocation7 + $0x508] sm:$0xff]
    %v285 = vld [vmem:[#allocation7 + $0x510] sm:$0xff]
    %v286 = vld [vmem:[#allocation7 + $0x518] sm:$0xff]
    %v287 = vld [vmem:[#allocation7 + $0x520] sm:$0xff]
    %v288 = vld [vmem:[#allocation7 + $0x528] sm:$0xff]
    %v289 = vld [vmem:[#allocation7 + $0x530] sm:$0xff]
    %v290 = vld [vmem:[#allocation7 + $0x538] sm:$0xff]
    %v291 = vld [vmem:[#allocation7 + $0x540] sm:$0xff]
    %v292 = vld [vmem:[#allocation7 + $0x548] sm:$0xff]
    %v293 = vld [vmem:[#allocation7 + $0x550] sm:$0xff]
    %v294 = vld [vmem:[#allocation7 + $0x558] sm:$0xff]
    %v295 = vld [vmem:[#allocation7 + $0x560] sm:$0xff]
    %v296 = vld [vmem:[#allocation7 + $0x568] sm:$0xff]
    %v297 = vld [vmem:[#allocation7 + $0x570] sm:$0xff]
    %v298 = vld [vmem:[#allocation7 + $0x578] sm:$0xff]
    %v299 = vld [vmem:[#allocation7 + $0x580] sm:$0xff]
    %v300 = vld [vmem:[#allocation7 + $0x588] sm:$0xff]
    %v301 = vld [vmem:[#allocation7 + $0x590] sm:$0xff]
    %v302 = vld [vmem:[#allocation7 + $0x598] sm:$0xff]
    %v303 = vld [vmem:[#allocation7 + $0x5a0] sm:$0xff]
    %v304 = vld [vmem:[#allocation7 + $0x5a8] sm:$0xff]
    %v305 = vld [vmem:[#allocation7 + $0x5b0] sm:$0xff]
    %v306 = vld [vmem:[#allocation7 + $0x5b8] sm:$0xff]
    %v307 = vld [vmem:[#allocation7 + $0x5c0] sm:$0xff]
    %v308 = vld [vmem:[#allocation7 + $0x5c8] sm:$0xff]
    %v309 = vld [vmem:[#allocation7 + $0x5d0] sm:$0xff]
    %v310 = vld [vmem:[#allocation7 + $0x5d8] sm:$0xff]
    %v311 = vld [vmem:[#allocation7 + $0x5e0] sm:$0xff]
    %v312 = vld [vmem:[#allocation7 + $0x5e8] sm:$0xff]
    %v313 = vld [vmem:[#allocation7 + $0x5f0] sm:$0xff]
    %v314 = vld [vmem:[#allocation7 + $0x5f8] sm:$0xff]
    %v315 = vld [vmem:[#allocation7 + $0x600] sm:$0xff]
    %v316 = vld [vmem:[#allocation7 + $0x608] sm:$0xff]
    %v317 = vld [vmem:[#allocation7 + $0x610] sm:$0xff]
    %v318 = vld [vmem:[#allocation7 + $0x618] sm:$0xff]
    %v319 = vld [vmem:[#allocation7 + $0x620] sm:$0xff]
    %v320 = vld [vmem:[#allocation7 + $0x628] sm:$0xff]
    %v321 = vld [vmem:[#allocation7 + $0x630] sm:$0xff]
    %v322 = vld [vmem:[#allocation7 + $0x638] sm:$0xff]
    %v323 = vld [vmem:[#allocation7 + $0x640] sm:$0xff]
    %v324 = vld [vmem:[#allocation7 + $0x648] sm:$0xff]
    %v325 = vld [vmem:[#allocation7 + $0x650] sm:$0xff]
    %v326 = vld [vmem:[#allocation7 + $0x658] sm:$0xff]
    %v327 = vld [vmem:[#allocation7 + $0x660] sm:$0xff]
    %v328 = vld [vmem:[#allocation7 + $0x668] sm:$0xff]
    %v329 = vld [vmem:[#allocation7 + $0x670] sm:$0xff]
    %v330 = vld [vmem:[#allocation7 + $0x678] sm:$0xff]
    %v331 = vld [vmem:[#allocation7 + $0x680] sm:$0xff]
    %v332 = vld [vmem:[#allocation7 + $0x688] sm:$0xff]
    %v333 = vld [vmem:[#allocation7 + $0x690] sm:$0xff]
    %v334 = vld [vmem:[#allocation7 + $0x698] sm:$0xff]
    %v335 = vld [vmem:[#allocation7 + $0x6a0] sm:$0xff]
    %v336 = vld [vmem:[#allocation7 + $0x6a8] sm:$0xff]
    %v337 = vld [vmem:[#allocation7 + $0x6b0] sm:$0xff]
    %v338 = vld [vmem:[#allocation7 + $0x6b8] sm:$0xff]
    %v339 = vld [vmem:[#allocation7 + $0x6c0] sm:$0xff]
    %v340 = vld [vmem:[#allocation7 + $0x6c8] sm:$0xff]
    %v341 = vld [vmem:[#allocation7 + $0x6d0] sm:$0xff]
    %v342 = vld [vmem:[#allocation7 + $0x6d8] sm:$0xff]
    %v343 = vld [vmem:[#allocation7 + $0x6e0] sm:$0xff]
    %v344 = vld [vmem:[#allocation7 + $0x6e8] sm:$0xff]
    %v345 = vld [vmem:[#allocation7 + $0x6f0] sm:$0xff]
    %v346 = vld [vmem:[#allocation7 + $0x6f8] sm:$0xff]
    %v347 = vld [vmem:[#allocation7 + $0x700] sm:$0xff]
    %v348 = vld [vmem:[#allocation7 + $0x708] sm:$0xff]
    %v349 = vld [vmem:[#allocation7 + $0x710] sm:$0xff]
    %v350 = vld [vmem:[#allocation7 + $0x718] sm:$0xff]
    %v351 = vld [vmem:[#allocation7 + $0x720] sm:$0xff]
    %v352 = vld [vmem:[#allocation7 + $0x728] sm:$0xff]
    %v353 = vld [vmem:[#allocation7 + $0x730] sm:$0xff]
    %v354 = vld [vmem:[#allocation7 + $0x738] sm:$0xff]
    %v355 = vld [vmem:[#allocation7 + $0x740] sm:$0xff]
    %v356 = vld [vmem:[#allocation7 + $0x748] sm:$0xff]
    %v357 = vld [vmem:[#allocation7 + $0x750] sm:$0xff]
    %v358 = vld [vmem:[#allocation7 + $0x758] sm:$0xff]
    %v359 = vld [vmem:[#allocation7 + $0x760] sm:$0xff]
    %v360 = vld [vmem:[#allocation7 + $0x768] sm:$0xff]
    %v361 = vld [vmem:[#allocation7 + $0x770] sm:$0xff]
    %v362 = vld [vmem:[#allocation7 + $0x778] sm:$0xff]
    %v363 = vld [vmem:[#allocation7 + $0x780] sm:$0xff]
    %v364 = vld [vmem:[#allocation7 + $0x788] sm:$0xff]
    %v365 = vld [vmem:[#allocation7 + $0x790] sm:$0xff]
    %v366 = vld [vmem:[#allocation7 + $0x798] sm:$0xff]
    %v367 = vld [vmem:[#allocation7 + $0x7a0] sm:$0xff]
    %v368 = vld [vmem:[#allocation7 + $0x7a8] sm:$0xff]
    %v369 = vld [vmem:[#allocation7 + $0x7b0] sm:$0xff]
    %v370 = vld [vmem:[#allocation7 + $0x7b8] sm:$0xff]
    %v371 = vld [vmem:[#allocation7 + $0x7c0] sm:$0xff]
    %v372 = vld [vmem:[#allocation7 + $0x7c8] sm:$0xff]
    %v623 = vunpack.c.l.b16 %v123
    %v624 = vunpack.c.h.b16 %v123
    %v625 = vunpack.c.l.b16 %v124
    %v626 = vunpack.c.h.b16 %v124
    %v627 = vunpack.c.l.b16 %v125
    %v628 = vunpack.c.h.b16 %v125
    %v629 = vunpack.c.l.b16 %v126
    %v630 = vunpack.c.h.b16 %v126
    %v631 = vunpack.c.l.b16 %v127
    %v632 = vunpack.c.h.b16 %v127
    %v633 = vunpack.c.l.b16 %v128
    %v634 = vunpack.c.h.b16 %v128
    %v635 = vunpack.c.l.b16 %v129
    %v636 = vunpack.c.h.b16 %v129
    %v637 = vunpack.c.l.b16 %v130
    %v638 = vunpack.c.h.b16 %v130
    %v639 = vunpack.c.l.b16 %v131
    %v640 = vunpack.c.h.b16 %v131
    %v641 = vunpack.c.l.b16 %v132
    %v642 = vunpack.c.h.b16 %v132
    %v643 = vunpack.c.l.b16 %v133
    %v644 = vunpack.c.h.b16 %v133
    %v645 = vunpack.c.l.b16 %v134
    %v646 = vunpack.c.h.b16 %v134
    %v647 = vunpack.c.l.b16 %v135
    %v648 = vunpack.c.h.b16 %v135
    %v649 = vunpack.c.l.b16 %v136
    %v650 = vunpack.c.h.b16 %v136
    %v651 = vunpack.c.l.b16 %v137
    %v652 = vunpack.c.h.b16 %v137
    %v653 = vunpack.c.l.b16 %v138
    %v654 = vunpack.c.h.b16 %v138
    %v655 = vunpack.c.l.b16 %v139
    %v656 = vunpack.c.h.b16 %v139
    %v657 = vunpack.c.l.b16 %v140
    %v658 = vunpack.c.h.b16 %v140
    %v659 = vunpack.c.l.b16 %v141
    %v660 = vunpack.c.h.b16 %v141
    %v661 = vunpack.c.l.b16 %v142
    %v662 = vunpack.c.h.b16 %v142
    %v663 = vunpack.c.l.b16 %v143
    %v664 = vunpack.c.h.b16 %v143
    %v665 = vunpack.c.l.b16 %v144
    %v666 = vunpack.c.h.b16 %v144
    %v667 = vunpack.c.l.b16 %v145
    %v668 = vunpack.c.h.b16 %v145
    %v669 = vunpack.c.l.b16 %v146
    %v670 = vunpack.c.h.b16 %v146
    %v671 = vunpack.c.l.b16 %v147
    %v672 = vunpack.c.h.b16 %v147
    %v673 = vunpack.c.l.b16 %v148
    %v674 = vunpack.c.h.b16 %v148
    %v675 = vunpack.c.l.b16 %v149
    %v676 = vunpack.c.h.b16 %v149
    %v677 = vunpack.c.l.b16 %v150
    %v678 = vunpack.c.h.b16 %v150
    %v679 = vunpack.c.l.b16 %v151
    %v680 = vunpack.c.h.b16 %v151
    %v681 = vunpack.c.l.b16 %v152
    %v682 = vunpack.c.h.b16 %v152
    %v683 = vunpack.c.l.b16 %v153
    %v684 = vunpack.c.h.b16 %v153
    %v685 = vunpack.c.l.b16 %v154
    %v686 = vunpack.c.h.b16 %v154
    %v687 = vunpack.c.l.b16 %v155
    %v688 = vunpack.c.h.b16 %v155
    %v689 = vunpack.c.l.b16 %v156
    %v690 = vunpack.c.h.b16 %v156
    %v691 = vunpack.c.l.b16 %v157
    %v692 = vunpack.c.h.b16 %v157
    %v693 = vunpack.c.l.b16 %v158
    %v694 = vunpack.c.h.b16 %v158
    %v695 = vunpack.c.l.b16 %v159
    %v696 = vunpack.c.h.b16 %v159
    %v697 = vunpack.c.l.b16 %v160
    %v698 = vunpack.c.h.b16 %v160
    %v699 = vunpack.c.l.b16 %v161
    %v700 = vunpack.c.h.b16 %v161
    %v701 = vunpack.c.l.b16 %v162
    %v702 = vunpack.c.h.b16 %v162
    %v703 = vunpack.c.l.b16 %v163
    %v704 = vunpack.c.h.b16 %v163
    %v705 = vunpack.c.l.b16 %v164
    %v706 = vunpack.c.h.b16 %v164
    %v707 = vunpack.c.l.b16 %v165
    %v708 = vunpack.c.h.b16 %v165
    %v709 = vunpack.c.l.b16 %v166
    %v710 = vunpack.c.h.b16 %v166
    %v711 = vunpack.c.l.b16 %v167
    %v712 = vunpack.c.h.b16 %v167
    %v713 = vunpack.c.l.b16 %v168
    %v714 = vunpack.c.h.b16 %v168
    %v715 = vunpack.c.l.b16 %v169
    %v716 = vunpack.c.h.b16 %v169
    %v717 = vunpack.c.l.b16 %v170
    %v718 = vunpack.c.h.b16 %v170
    %v719 = vunpack.c.l.b16 %v171
    %v720 = vunpack.c.h.b16 %v171
    %v721 = vunpack.c.l.b16 %v172
    %v722 = vunpack.c.h.b16 %v172
    %v723 = vunpack.c.l.b16 %v173
    %v724 = vunpack.c.h.b16 %v173
    %v725 = vunpack.c.l.b16 %v174
    %v726 = vunpack.c.h.b16 %v174
    %v727 = vunpack.c.l.b16 %v175
    %v728 = vunpack.c.h.b16 %v175
    %v729 = vunpack.c.l.b16 %v176
    %v730 = vunpack.c.h.b16 %v176
    %v731 = vunpack.c.l.b16 %v177
    %v732 = vunpack.c.h.b16 %v177
    %v733 = vunpack.c.l.b16 %v178
    %v734 = vunpack.c.h.b16 %v178
    %v735 = vunpack.c.l.b16 %v179
    %v736 = vunpack.c.h.b16 %v179
    %v737 = vunpack.c.l.b16 %v180
    %v738 = vunpack.c.h.b16 %v180
    %v739 = vunpack.c.l.b16 %v181
    %v740 = vunpack.c.h.b16 %v181
    %v741 = vunpack.c.l.b16 %v182
    %v742 = vunpack.c.h.b16 %v182
    %v743 = vunpack.c.l.b16 %v183
    %v744 = vunpack.c.h.b16 %v183
    %v745 = vunpack.c.l.b16 %v184
    %v746 = vunpack.c.h.b16 %v184
    %v747 = vunpack.c.l.b16 %v185
    %v748 = vunpack.c.h.b16 %v185
    %v749 = vunpack.c.l.b16 %v186
    %v750 = vunpack.c.h.b16 %v186
    %v751 = vunpack.c.l.b16 %v187
    %v752 = vunpack.c.h.b16 %v187
    %v753 = vunpack.c.l.b16 %v188
    %v754 = vunpack.c.h.b16 %v188
    %v755 = vunpack.c.l.b16 %v189
    %v756 = vunpack.c.h.b16 %v189
    %v757 = vunpack.c.l.b16 %v190
    %v758 = vunpack.c.h.b16 %v190
    %v759 = vunpack.c.l.b16 %v191
    %v760 = vunpack.c.h.b16 %v191
    %v761 = vunpack.c.l.b16 %v192
    %v762 = vunpack.c.h.b16 %v192
    %v763 = vunpack.c.l.b16 %v193
    %v764 = vunpack.c.h.b16 %v193
    %v765 = vunpack.c.l.b16 %v194
    %v766 = vunpack.c.h.b16 %v194
    %v767 = vunpack.c.l.b16 %v195
    %v768 = vunpack.c.h.b16 %v195
    %v769 = vunpack.c.l.b16 %v196
    %v770 = vunpack.c.h.b16 %v196
    %v771 = vunpack.c.l.b16 %v197
    %v772 = vunpack.c.h.b16 %v197
    %v773 = vunpack.c.l.b16 %v198
    %v774 = vunpack.c.h.b16 %v198
    %v775 = vunpack.c.l.b16 %v199
    %v776 = vunpack.c.h.b16 %v199
    %v777 = vunpack.c.l.b16 %v200
    %v778 = vunpack.c.h.b16 %v200
    %v779 = vunpack.c.l.b16 %v201
    %v780 = vunpack.c.h.b16 %v201
    %v781 = vunpack.c.l.b16 %v202
    %v782 = vunpack.c.h.b16 %v202
    %v783 = vunpack.c.l.b16 %v203
    %v784 = vunpack.c.h.b16 %v203
    %v785 = vunpack.c.l.b16 %v204
    %v786 = vunpack.c.h.b16 %v204
    %v787 = vunpack.c.l.b16 %v205
    %v788 = vunpack.c.h.b16 %v205
    %v789 = vunpack.c.l.b16 %v206
    %v790 = vunpack.c.h.b16 %v206
    %v791 = vunpack.c.l.b16 %v207
    %v792 = vunpack.c.h.b16 %v207
    %v793 = vunpack.c.l.b16 %v208
    %v794 = vunpack.c.h.b16 %v208
    %v795 = vunpack.c.l.b16 %v209
    %v796 = vunpack.c.h.b16 %v209
    %v797 = vunpack.c.l.b16 %v210
    %v798 = vunpack.c.h.b16 %v210
    %v799 = vunpack.c.l.b16 %v211
    %v800 = vunpack.c.h.b16 %v211
    %v801 = vunpack.c.l.b16 %v212
    %v802 = vunpack.c.h.b16 %v212
    %v803 = vunpack.c.l.b16 %v213
    %v804 = vunpack.c.h.b16 %v213
    %v805 = vunpack.c.l.b16 %v214
    %v806 = vunpack.c.h.b16 %v214
    %v807 = vunpack.c.l.b16 %v215
    %v808 = vunpack.c.h.b16 %v215
    %v809 = vunpack.c.l.b16 %v216
    %v810 = vunpack.c.h.b16 %v216
    %v811 = vunpack.c.l.b16 %v217
    %v812 = vunpack.c.h.b16 %v217
    %v813 = vunpack.c.l.b16 %v218
    %v814 = vunpack.c.h.b16 %v218
    %v815 = vunpack.c.l.b16 %v219
    %v816 = vunpack.c.h.b16 %v219
    %v817 = vunpack.c.l.b16 %v220
    %v818 = vunpack.c.h.b16 %v220
    %v819 = vunpack.c.l.b16 %v221
    %v820 = vunpack.c.h.b16 %v221
    %v821 = vunpack.c.l.b16 %v222
    %v822 = vunpack.c.h.b16 %v222
    %v823 = vunpack.c.l.b16 %v223
    %v824 = vunpack.c.h.b16 %v223
    %v825 = vunpack.c.l.b16 %v224
    %v826 = vunpack.c.h.b16 %v224
    %v827 = vunpack.c.l.b16 %v225
    %v828 = vunpack.c.h.b16 %v225
    %v829 = vunpack.c.l.b16 %v226
    %v830 = vunpack.c.h.b16 %v226
    %v831 = vunpack.c.l.b16 %v227
    %v832 = vunpack.c.h.b16 %v227
    %v833 = vunpack.c.l.b16 %v228
    %v834 = vunpack.c.h.b16 %v228
    %v835 = vunpack.c.l.b16 %v229
    %v836 = vunpack.c.h.b16 %v229
    %v837 = vunpack.c.l.b16 %v230
    %v838 = vunpack.c.h.b16 %v230
    %v839 = vunpack.c.l.b16 %v231
    %v840 = vunpack.c.h.b16 %v231
    %v841 = vunpack.c.l.b16 %v232
    %v842 = vunpack.c.h.b16 %v232
    %v843 = vunpack.c.l.b16 %v233
    %v844 = vunpack.c.h.b16 %v233
    %v845 = vunpack.c.l.b16 %v234
    %v846 = vunpack.c.h.b16 %v234
    %v847 = vunpack.c.l.b16 %v235
    %v848 = vunpack.c.h.b16 %v235
    %v849 = vunpack.c.l.b16 %v236
    %v850 = vunpack.c.h.b16 %v236
    %v851 = vunpack.c.l.b16 %v237
    %v852 = vunpack.c.h.b16 %v237
    %v853 = vunpack.c.l.b16 %v238
    %v854 = vunpack.c.h.b16 %v238
    %v855 = vunpack.c.l.b16 %v239
    %v856 = vunpack.c.h.b16 %v239
    %v857 = vunpack.c.l.b16 %v240
    %v858 = vunpack.c.h.b16 %v240
    %v859 = vunpack.c.l.b16 %v241
    %v860 = vunpack.c.h.b16 %v241
    %v861 = vunpack.c.l.b16 %v242
    %v862 = vunpack.c.h.b16 %v242
    %v863 = vunpack.c.l.b16 %v243
    %v864 = vunpack.c.h.b16 %v243
    %v865 = vunpack.c.l.b16 %v244
    %v866 = vunpack.c.h.b16 %v244
    %v867 = vunpack.c.l.b16 %v245
    %v868 = vunpack.c.h.b16 %v245
    %v869 = vunpack.c.l.b16 %v246
    %v870 = vunpack.c.h.b16 %v246
    %v871 = vunpack.c.l.b16 %v247
    %v872 = vunpack.c.h.b16 %v247
    %v873 = vunpack.c.l.b16 %v248
    %v874 = vunpack.c.h.b16 %v248
    %v875 = vunpack.c.l.b16 %v249
    %v876 = vunpack.c.h.b16 %v249
    %v877 = vunpack.c.l.b16 %v250
    %v878 = vunpack.c.h.b16 %v250
    %v879 = vunpack.c.l.b16 %v251
    %v880 = vunpack.c.h.b16 %v251
    %v881 = vunpack.c.l.b16 %v252
    %v882 = vunpack.c.h.b16 %v252
    %v883 = vunpack.c.l.b16 %v253
    %v884 = vunpack.c.h.b16 %v253
    %v885 = vunpack.c.l.b16 %v254
    %v886 = vunpack.c.h.b16 %v254
    %v887 = vunpack.c.l.b16 %v255
    %v888 = vunpack.c.h.b16 %v255
    %v889 = vunpack.c.l.b16 %v256
    %v890 = vunpack.c.h.b16 %v256
    %v891 = vunpack.c.l.b16 %v257
    %v892 = vunpack.c.h.b16 %v257
    %v893 = vunpack.c.l.b16 %v258
    %v894 = vunpack.c.h.b16 %v258
    %v895 = vunpack.c.l.b16 %v259
    %v896 = vunpack.c.h.b16 %v259
    %v897 = vunpack.c.l.b16 %v260
    %v898 = vunpack.c.h.b16 %v260
    %v899 = vunpack.c.l.b16 %v261
    %v900 = vunpack.c.h.b16 %v261
    %v901 = vunpack.c.l.b16 %v262
    %v902 = vunpack.c.h.b16 %v262
    %v903 = vunpack.c.l.b16 %v263
    %v904 = vunpack.c.h.b16 %v263
    %v905 = vunpack.c.l.b16 %v264
    %v906 = vunpack.c.h.b16 %v264
    %v907 = vunpack.c.l.b16 %v265
    %v908 = vunpack.c.h.b16 %v265
    %v909 = vunpack.c.l.b16 %v266
    %v910 = vunpack.c.h.b16 %v266
    %v911 = vunpack.c.l.b16 %v267
    %v912 = vunpack.c.h.b16 %v267
    %v913 = vunpack.c.l.b16 %v268
    %v914 = vunpack.c.h.b16 %v268
    %v915 = vunpack.c.l.b16 %v269
    %v916 = vunpack.c.h.b16 %v269
    %v917 = vunpack.c.l.b16 %v270
    %v918 = vunpack.c.h.b16 %v270
    %v919 = vunpack.c.l.b16 %v271
    %v920 = vunpack.c.h.b16 %v271
    %v921 = vunpack.c.l.b16 %v272
    %v922 = vunpack.c.h.b16 %v272
    %v923 = vunpack.c.l.b16 %v273
    %v924 = vunpack.c.h.b16 %v273
    %v925 = vunpack.c.l.b16 %v274
    %v926 = vunpack.c.h.b16 %v274
    %v927 = vunpack.c.l.b16 %v275
    %v928 = vunpack.c.h.b16 %v275
    %v929 = vunpack.c.l.b16 %v276
    %v930 = vunpack.c.h.b16 %v276
    %v931 = vunpack.c.l.b16 %v277
    %v932 = vunpack.c.h.b16 %v277
    %v933 = vunpack.c.l.b16 %v278
    %v934 = vunpack.c.h.b16 %v278
    %v935 = vunpack.c.l.b16 %v279
    %v936 = vunpack.c.h.b16 %v279
    %v937 = vunpack.c.l.b16 %v280
    %v938 = vunpack.c.h.b16 %v280
    %v939 = vunpack.c.l.b16 %v281
    %v940 = vunpack.c.h.b16 %v281
    %v941 = vunpack.c.l.b16 %v282
    %v942 = vunpack.c.h.b16 %v282
    %v943 = vunpack.c.l.b16 %v283
    %v944 = vunpack.c.h.b16 %v283
    %v945 = vunpack.c.l.b16 %v284
    %v946 = vunpack.c.h.b16 %v284
    %v947 = vunpack.c.l.b16 %v285
    %v948 = vunpack.c.h.b16 %v285
    %v949 = vunpack.c.l.b16 %v286
    %v950 = vunpack.c.h.b16 %v286
    %v951 = vunpack.c.l.b16 %v287
    %v952 = vunpack.c.h.b16 %v287
    %v953 = vunpack.c.l.b16 %v288
    %v954 = vunpack.c.h.b16 %v288
    %v955 = vunpack.c.l.b16 %v289
    %v956 = vunpack.c.h.b16 %v289
    %v957 = vunpack.c.l.b16 %v290
    %v958 = vunpack.c.h.b16 %v290
    %v959 = vunpack.c.l.b16 %v291
    %v960 = vunpack.c.h.b16 %v291
    %v961 = vunpack.c.l.b16 %v292
    %v962 = vunpack.c.h.b16 %v292
    %v963 = vunpack.c.l.b16 %v293
    %v964 = vunpack.c.h.b16 %v293
    %v965 = vunpack.c.l.b16 %v294
    %v966 = vunpack.c.h.b16 %v294
    %v967 = vunpack.c.l.b16 %v295
    %v968 = vunpack.c.h.b16 %v295
    %v969 = vunpack.c.l.b16 %v296
    %v970 = vunpack.c.h.b16 %v296
    %v971 = vunpack.c.l.b16 %v297
    %v972 = vunpack.c.h.b16 %v297
    %v973 = vunpack.c.l.b16 %v298
    %v974 = vunpack.c.h.b16 %v298
    %v975 = vunpack.c.l.b16 %v299
    %v976 = vunpack.c.h.b16 %v299
    %v977 = vunpack.c.l.b16 %v300
    %v978 = vunpack.c.h.b16 %v300
    %v979 = vunpack.c.l.b16 %v301
    %v980 = vunpack.c.h.b16 %v301
    %v981 = vunpack.c.l.b16 %v302
    %v982 = vunpack.c.h.b16 %v302
    %v983 = vunpack.c.l.b16 %v303
    %v984 = vunpack.c.h.b16 %v303
    %v985 = vunpack.c.l.b16 %v304
    %v986 = vunpack.c.h.b16 %v304
    %v987 = vunpack.c.l.b16 %v305
    %v988 = vunpack.c.h.b16 %v305
    %v989 = vunpack.c.l.b16 %v306
    %v990 = vunpack.c.h.b16 %v306
    %v991 = vunpack.c.l.b16 %v307
    %v992 = vunpack.c.h.b16 %v307
    %v993 = vunpack.c.l.b16 %v308
    %v994 = vunpack.c.h.b16 %v308
    %v995 = vunpack.c.l.b16 %v309
    %v996 = vunpack.c.h.b16 %v309
    %v997 = vunpack.c.l.b16 %v310
    %v998 = vunpack.c.h.b16 %v310
    %v999 = vunpack.c.l.b16 %v311
    %v1000 = vunpack.c.h.b16 %v311
    %v1001 = vunpack.c.l.b16 %v312
    %v1002 = vunpack.c.h.b16 %v312
    %v1003 = vunpack.c.l.b16 %v313
    %v1004 = vunpack.c.h.b16 %v313
    %v1005 = vunpack.c.l.b16 %v314
    %v1006 = vunpack.c.h.b16 %v314
    %v1007 = vunpack.c.l.b16 %v315
    %v1008 = vunpack.c.h.b16 %v315
    %v1009 = vunpack.c.l.b16 %v316
    %v1010 = vunpack.c.h.b16 %v316
    %v1011 = vunpack.c.l.b16 %v317
    %v1012 = vunpack.c.h.b16 %v317
    %v1013 = vunpack.c.l.b16 %v318
    %v1014 = vunpack.c.h.b16 %v318
    %v1015 = vunpack.c.l.b16 %v319
    %v1016 = vunpack.c.h.b16 %v319
    %v1017 = vunpack.c.l.b16 %v320
    %v1018 = vunpack.c.h.b16 %v320
    %v1019 = vunpack.c.l.b16 %v321
    %v1020 = vunpack.c.h.b16 %v321
    %v1021 = vunpack.c.l.b16 %v322
    %v1022 = vunpack.c.h.b16 %v322
    %v1023 = vunpack.c.l.b16 %v323
    %v1024 = vunpack.c.h.b16 %v323
    %v1025 = vunpack.c.l.b16 %v324
    %v1026 = vunpack.c.h.b16 %v324
    %v1027 = vunpack.c.l.b16 %v325
    %v1028 = vunpack.c.h.b16 %v325
    %v1029 = vunpack.c.l.b16 %v326
    %v1030 = vunpack.c.h.b16 %v326
    %v1031 = vunpack.c.l.b16 %v327
    %v1032 = vunpack.c.h.b16 %v327
    %v1033 = vunpack.c.l.b16 %v328
    %v1034 = vunpack.c.h.b16 %v328
    %v1035 = vunpack.c.l.b16 %v329
    %v1036 = vunpack.c.h.b16 %v329
    %v1037 = vunpack.c.l.b16 %v330
    %v1038 = vunpack.c.h.b16 %v330
    %v1039 = vunpack.c.l.b16 %v331
    %v1040 = vunpack.c.h.b16 %v331
    %v1041 = vunpack.c.l.b16 %v332
    %v1042 = vunpack.c.h.b16 %v332
    %v1043 = vunpack.c.l.b16 %v333
    %v1044 = vunpack.c.h.b16 %v333
    %v1045 = vunpack.c.l.b16 %v334
    %v1046 = vunpack.c.h.b16 %v334
    %v1047 = vunpack.c.l.b16 %v335
    %v1048 = vunpack.c.h.b16 %v335
    %v1049 = vunpack.c.l.b16 %v336
    %v1050 = vunpack.c.h.b16 %v336
    %v1051 = vunpack.c.l.b16 %v337
    %v1052 = vunpack.c.h.b16 %v337
    %v1053 = vunpack.c.l.b16 %v338
    %v1054 = vunpack.c.h.b16 %v338
    %v1055 = vunpack.c.l.b16 %v339
    %v1056 = vunpack.c.h.b16 %v339
    %v1057 = vunpack.c.l.b16 %v340
    %v1058 = vunpack.c.h.b16 %v340
    %v1059 = vunpack.c.l.b16 %v341
    %v1060 = vunpack.c.h.b16 %v341
    %v1061 = vunpack.c.l.b16 %v342
    %v1062 = vunpack.c.h.b16 %v342
    %v1063 = vunpack.c.l.b16 %v343
    %v1064 = vunpack.c.h.b16 %v343
    %v1065 = vunpack.c.l.b16 %v344
    %v1066 = vunpack.c.h.b16 %v344
    %v1067 = vunpack.c.l.b16 %v345
    %v1068 = vunpack.c.h.b16 %v345
    %v1069 = vunpack.c.l.b16 %v346
    %v1070 = vunpack.c.h.b16 %v346
    %v1071 = vunpack.c.l.b16 %v347
    %v1072 = vunpack.c.h.b16 %v347
    %v1073 = vunpack.c.l.b16 %v348
    %v1074 = vunpack.c.h.b16 %v348
    %v1075 = vunpack.c.l.b16 %v349
    %v1076 = vunpack.c.h.b16 %v349
    %v1077 = vunpack.c.l.b16 %v350
    %v1078 = vunpack.c.h.b16 %v350
    %v1079 = vunpack.c.l.b16 %v351
    %v1080 = vunpack.c.h.b16 %v351
    %v1081 = vunpack.c.l.b16 %v352
    %v1082 = vunpack.c.h.b16 %v352
    %v1083 = vunpack.c.l.b16 %v353
    %v1084 = vunpack.c.h.b16 %v353
    %v1085 = vunpack.c.l.b16 %v354
    %v1086 = vunpack.c.h.b16 %v354
    %v1087 = vunpack.c.l.b16 %v355
    %v1088 = vunpack.c.h.b16 %v355
    %v1089 = vunpack.c.l.b16 %v356
    %v1090 = vunpack.c.h.b16 %v356
    %v1091 = vunpack.c.l.b16 %v357
    %v1092 = vunpack.c.h.b16 %v357
    %v1093 = vunpack.c.l.b16 %v358
    %v1094 = vunpack.c.h.b16 %v358
    %v1095 = vunpack.c.l.b16 %v359
    %v1096 = vunpack.c.h.b16 %v359
    %v1097 = vunpack.c.l.b16 %v360
    %v1098 = vunpack.c.h.b16 %v360
    %v1099 = vunpack.c.l.b16 %v361
    %v1100 = vunpack.c.h.b16 %v361
    %v1101 = vunpack.c.l.b16 %v362
    %v1102 = vunpack.c.h.b16 %v362
    %v1103 = vunpack.c.l.b16 %v363
    %v1104 = vunpack.c.h.b16 %v363
    %v1105 = vunpack.c.l.b16 %v364
    %v1106 = vunpack.c.h.b16 %v364
    %v1107 = vunpack.c.l.b16 %v365
    %v1108 = vunpack.c.h.b16 %v365
    %v1109 = vunpack.c.l.b16 %v366
    %v1110 = vunpack.c.h.b16 %v366
    %v1111 = vunpack.c.l.b16 %v367
    %v1112 = vunpack.c.h.b16 %v367
    %v1113 = vunpack.c.l.b16 %v368
    %v1114 = vunpack.c.h.b16 %v368
    %v1115 = vunpack.c.l.b16 %v369
    %v1116 = vunpack.c.h.b16 %v369
    %v1117 = vunpack.c.l.b16 %v370
    %v1118 = vunpack.c.h.b16 %v370
    %v1119 = vunpack.c.l.b16 %v371
    %v1120 = vunpack.c.h.b16 %v371
    %v1121 = vunpack.c.l.b16 %v372
    %v1122 = vunpack.c.h.b16 %v372
    %v1123 = vpack.c.b16 %v627, %v623
    %v1124 = vpack.c.b16 %v628, %v624
    %v1125 = vpack.c.b16 %v629, %v625
    %v1126 = vpack.c.b16 %v630, %v626
    %v1127 = vpack.c.b16 %v635, %v631
    %v1128 = vpack.c.b16 %v636, %v632
    %v1129 = vpack.c.b16 %v637, %v633
    %v1130 = vpack.c.b16 %v638, %v634
    %v1131 = vpack.c.b16 %v643, %v639
    %v1132 = vpack.c.b16 %v644, %v640
    %v1133 = vpack.c.b16 %v645, %v641
    %v1134 = vpack.c.b16 %v646, %v642
    %v1135 = vpack.c.b16 %v651, %v647
    %v1136 = vpack.c.b16 %v652, %v648
    %v1137 = vpack.c.b16 %v653, %v649
    %v1138 = vpack.c.b16 %v654, %v650
    %v1139 = vpack.c.b16 %v659, %v655
    %v1140 = vpack.c.b16 %v660, %v656
    %v1141 = vpack.c.b16 %v661, %v657
    %v1142 = vpack.c.b16 %v662, %v658
    %v1143 = vpack.c.b16 %v667, %v663
    %v1144 = vpack.c.b16 %v668, %v664
    %v1145 = vpack.c.b16 %v669, %v665
    %v1146 = vpack.c.b16 %v670, %v666
    %v1147 = vpack.c.b16 %v675, %v671
    %v1148 = vpack.c.b16 %v676, %v672
    %v1149 = vpack.c.b16 %v677, %v673
    %v1150 = vpack.c.b16 %v678, %v674
    %v1151 = vpack.c.b16 %v683, %v679
    %v1152 = vpack.c.b16 %v684, %v680
    %v1153 = vpack.c.b16 %v685, %v681
    %v1154 = vpack.c.b16 %v686, %v682
    %v1155 = vpack.c.b16 %v691, %v687
    %v1156 = vpack.c.b16 %v692, %v688
    %v1157 = vpack.c.b16 %v693, %v689
    %v1158 = vpack.c.b16 %v694, %v690
    %v1159 = vpack.c.b16 %v699, %v695
    %v1160 = vpack.c.b16 %v700, %v696
    %v1161 = vpack.c.b16 %v701, %v697
    %v1162 = vpack.c.b16 %v702, %v698
    %v1163 = vpack.c.b16 %v707, %v703
    %v1164 = vpack.c.b16 %v708, %v704
    %v1165 = vpack.c.b16 %v709, %v705
    %v1166 = vpack.c.b16 %v710, %v706
    %v1167 = vpack.c.b16 %v715, %v711
    %v1168 = vpack.c.b16 %v716, %v712
    %v1169 = vpack.c.b16 %v717, %v713
    %v1170 = vpack.c.b16 %v718, %v714
    %v1171 = vpack.c.b16 %v723, %v719
    %v1172 = vpack.c.b16 %v724, %v720
    %v1173 = vpack.c.b16 %v725, %v721
    %v1174 = vpack.c.b16 %v726, %v722
    %v1175 = vpack.c.b16 %v731, %v727
    %v1176 = vpack.c.b16 %v732, %v728
    %v1177 = vpack.c.b16 %v733, %v729
    %v1178 = vpack.c.b16 %v734, %v730
    %v1179 = vpack.c.b16 %v739, %v735
    %v1180 = vpack.c.b16 %v740, %v736
    %v1181 = vpack.c.b16 %v741, %v737
    %v1182 = vpack.c.b16 %v742, %v738
    %v1183 = vpack.c.b16 %v747, %v743
    %v1184 = vpack.c.b16 %v748, %v744
    %v1185 = vpack.c.b16 %v749, %v745
    %v1186 = vpack.c.b16 %v750, %v746
    %v1187 = vpack.c.b16 %v755, %v751
    %v1188 = vpack.c.b16 %v756, %v752
    %v1189 = vpack.c.b16 %v757, %v753
    %v1190 = vpack.c.b16 %v758, %v754
    %v1191 = vpack.c.b16 %v763, %v759
    %v1192 = vpack.c.b16 %v764, %v760
    %v1193 = vpack.c.b16 %v765, %v761
    %v1194 = vpack.c.b16 %v766, %v762
    %v1195 = vpack.c.b16 %v771, %v767
    %v1196 = vpack.c.b16 %v772, %v768
    %v1197 = vpack.c.b16 %v773, %v769
    %v1198 = vpack.c.b16 %v774, %v770
    %v1199 = vpack.c.b16 %v779, %v775
    %v1200 = vpack.c.b16 %v780, %v776
    %v1201 = vpack.c.b16 %v781, %v777
    %v1202 = vpack.c.b16 %v782, %v778
    %v1203 = vpack.c.b16 %v787, %v783
    %v1204 = vpack.c.b16 %v788, %v784
    %v1205 = vpack.c.b16 %v789, %v785
    %v1206 = vpack.c.b16 %v790, %v786
    %v1207 = vpack.c.b16 %v795, %v791
    %v1208 = vpack.c.b16 %v796, %v792
    %v1209 = vpack.c.b16 %v797, %v793
    %v1210 = vpack.c.b16 %v798, %v794
    %v1211 = vpack.c.b16 %v803, %v799
    %v1212 = vpack.c.b16 %v804, %v800
    %v1213 = vpack.c.b16 %v805, %v801
    %v1214 = vpack.c.b16 %v806, %v802
    %v1215 = vpack.c.b16 %v811, %v807
    %v1216 = vpack.c.b16 %v812, %v808
    %v1217 = vpack.c.b16 %v813, %v809
    %v1218 = vpack.c.b16 %v814, %v810
    %v1219 = vpack.c.b16 %v819, %v815
    %v1220 = vpack.c.b16 %v820, %v816
    %v1221 = vpack.c.b16 %v821, %v817
    %v1222 = vpack.c.b16 %v822, %v818
    %v1223 = vpack.c.b16 %v827, %v823
    %v1224 = vpack.c.b16 %v828, %v824
    %v1225 = vpack.c.b16 %v829, %v825
    %v1226 = vpack.c.b16 %v830, %v826
    %v1227 = vpack.c.b16 %v835, %v831
    %v1228 = vpack.c.b16 %v836, %v832
    %v1229 = vpack.c.b16 %v837, %v833
    %v1230 = vpack.c.b16 %v838, %v834
    %v1231 = vpack.c.b16 %v843, %v839
    %v1232 = vpack.c.b16 %v844, %v840
    %v1233 = vpack.c.b16 %v845, %v841
    %v1234 = vpack.c.b16 %v846, %v842
    %v1235 = vpack.c.b16 %v851, %v847
    %v1236 = vpack.c.b16 %v852, %v848
    %v1237 = vpack.c.b16 %v853, %v849
    %v1238 = vpack.c.b16 %v854, %v850
    %v1239 = vpack.c.b16 %v859, %v855
    %v1240 = vpack.c.b16 %v860, %v856
    %v1241 = vpack.c.b16 %v861, %v857
    %v1242 = vpack.c.b16 %v862, %v858
    %v1243 = vpack.c.b16 %v867, %v863
    %v1244 = vpack.c.b16 %v868, %v864
    %v1245 = vpack.c.b16 %v869, %v865
    %v1246 = vpack.c.b16 %v870, %v866
    %v1247 = vpack.c.b16 %v875, %v871
    %v1248 = vpack.c.b16 %v876, %v872
    %v1249 = vpack.c.b16 %v877, %v873
    %v1250 = vpack.c.b16 %v878, %v874
    %v1251 = vpack.c.b16 %v883, %v879
    %v1252 = vpack.c.b16 %v884, %v880
    %v1253 = vpack.c.b16 %v885, %v881
    %v1254 = vpack.c.b16 %v886, %v882
    %v1255 = vpack.c.b16 %v891, %v887
    %v1256 = vpack.c.b16 %v892, %v888
    %v1257 = vpack.c.b16 %v893, %v889
    %v1258 = vpack.c.b16 %v894, %v890
    %v1259 = vpack.c.b16 %v899, %v895
    %v1260 = vpack.c.b16 %v900, %v896
    %v1261 = vpack.c.b16 %v901, %v897
    %v1262 = vpack.c.b16 %v902, %v898
    %v1263 = vpack.c.b16 %v907, %v903
    %v1264 = vpack.c.b16 %v908, %v904
    %v1265 = vpack.c.b16 %v909, %v905
    %v1266 = vpack.c.b16 %v910, %v906
    %v1267 = vpack.c.b16 %v915, %v911
    %v1268 = vpack.c.b16 %v916, %v912
    %v1269 = vpack.c.b16 %v917, %v913
    %v1270 = vpack.c.b16 %v918, %v914
    %v1271 = vpack.c.b16 %v923, %v919
    %v1272 = vpack.c.b16 %v924, %v920
    %v1273 = vpack.c.b16 %v925, %v921
    %v1274 = vpack.c.b16 %v926, %v922
    %v1275 = vpack.c.b16 %v931, %v927
    %v1276 = vpack.c.b16 %v932, %v928
    %v1277 = vpack.c.b16 %v933, %v929
    %v1278 = vpack.c.b16 %v934, %v930
    %v1279 = vpack.c.b16 %v939, %v935
    %v1280 = vpack.c.b16 %v940, %v936
    %v1281 = vpack.c.b16 %v941, %v937
    %v1282 = vpack.c.b16 %v942, %v938
    %v1283 = vpack.c.b16 %v947, %v943
    %v1284 = vpack.c.b16 %v948, %v944
    %v1285 = vpack.c.b16 %v949, %v945
    %v1286 = vpack.c.b16 %v950, %v946
    %v1287 = vpack.c.b16 %v955, %v951
    %v1288 = vpack.c.b16 %v956, %v952
    %v1289 = vpack.c.b16 %v957, %v953
    %v1290 = vpack.c.b16 %v958, %v954
    %v1291 = vpack.c.b16 %v963, %v959
    %v1292 = vpack.c.b16 %v964, %v960
    %v1293 = vpack.c.b16 %v965, %v961
    %v1294 = vpack.c.b16 %v966, %v962
    %v1295 = vpack.c.b16 %v971, %v967
    %v1296 = vpack.c.b16 %v972, %v968
    %v1297 = vpack.c.b16 %v973, %v969
    %v1298 = vpack.c.b16 %v974, %v970
    %v1299 = vpack.c.b16 %v979, %v975
    %v1300 = vpack.c.b16 %v980, %v976
    %v1301 = vpack.c.b16 %v981, %v977
    %v1302 = vpack.c.b16 %v982, %v978
    %v1303 = vpack.c.b16 %v987, %v983
    %v1304 = vpack.c.b16 %v988, %v984
    %v1305 = vpack.c.b16 %v989, %v985
    %v1306 = vpack.c.b16 %v990, %v986
    %v1307 = vpack.c.b16 %v995, %v991
    %v1308 = vpack.c.b16 %v996, %v992
    %v1309 = vpack.c.b16 %v997, %v993
    %v1310 = vpack.c.b16 %v998, %v994
    %v1311 = vpack.c.b16 %v1003, %v999
    %v1312 = vpack.c.b16 %v1004, %v1000
    %v1313 = vpack.c.b16 %v1005, %v1001
    %v1314 = vpack.c.b16 %v1006, %v1002
    %v1315 = vpack.c.b16 %v1011, %v1007
    %v1316 = vpack.c.b16 %v1012, %v1008
    %v1317 = vpack.c.b16 %v1013, %v1009
    %v1318 = vpack.c.b16 %v1014, %v1010
    %v1319 = vpack.c.b16 %v1019, %v1015
    %v1320 = vpack.c.b16 %v1020, %v1016
    %v1321 = vpack.c.b16 %v1021, %v1017
    %v1322 = vpack.c.b16 %v1022, %v1018
    %v1323 = vpack.c.b16 %v1027, %v1023
    %v1324 = vpack.c.b16 %v1028, %v1024
    %v1325 = vpack.c.b16 %v1029, %v1025
    %v1326 = vpack.c.b16 %v1030, %v1026
    %v1327 = vpack.c.b16 %v1035, %v1031
    %v1328 = vpack.c.b16 %v1036, %v1032
    %v1329 = vpack.c.b16 %v1037, %v1033
    %v1330 = vpack.c.b16 %v1038, %v1034
    %v1331 = vpack.c.b16 %v1043, %v1039
    %v1332 = vpack.c.b16 %v1044, %v1040
    %v1333 = vpack.c.b16 %v1045, %v1041
    %v1334 = vpack.c.b16 %v1046, %v1042
    %v1335 = vpack.c.b16 %v1051, %v1047
    %v1336 = vpack.c.b16 %v1052, %v1048
    %v1337 = vpack.c.b16 %v1053, %v1049
    %v1338 = vpack.c.b16 %v1054, %v1050
    %v1339 = vpack.c.b16 %v1059, %v1055
    %v1340 = vpack.c.b16 %v1060, %v1056
    %v1341 = vpack.c.b16 %v1061, %v1057
    %v1342 = vpack.c.b16 %v1062, %v1058
    %v1343 = vpack.c.b16 %v1067, %v1063
    %v1344 = vpack.c.b16 %v1068, %v1064
    %v1345 = vpack.c.b16 %v1069, %v1065
    %v1346 = vpack.c.b16 %v1070, %v1066
    %v1347 = vpack.c.b16 %v1075, %v1071
    %v1348 = vpack.c.b16 %v1076, %v1072
    %v1349 = vpack.c.b16 %v1077, %v1073
    %v1350 = vpack.c.b16 %v1078, %v1074
    %v1351 = vpack.c.b16 %v1083, %v1079
    %v1352 = vpack.c.b16 %v1084, %v1080
    %v1353 = vpack.c.b16 %v1085, %v1081
    %v1354 = vpack.c.b16 %v1086, %v1082
    %v1355 = vpack.c.b16 %v1091, %v1087
    %v1356 = vpack.c.b16 %v1092, %v1088
    %v1357 = vpack.c.b16 %v1093, %v1089
    %v1358 = vpack.c.b16 %v1094, %v1090
    %v1359 = vpack.c.b16 %v1099, %v1095
    %v1360 = vpack.c.b16 %v1100, %v1096
    %v1361 = vpack.c.b16 %v1101, %v1097
    %v1362 = vpack.c.b16 %v1102, %v1098
    %v1363 = vpack.c.b16 %v1107, %v1103
    %v1364 = vpack.c.b16 %v1108, %v1104
    %v1365 = vpack.c.b16 %v1109, %v1105
    %v1366 = vpack.c.b16 %v1110, %v1106
    %v1367 = vpack.c.b16 %v1115, %v1111
    %v1368 = vpack.c.b16 %v1116, %v1112
    %v1369 = vpack.c.b16 %v1117, %v1113
    %v1370 = vpack.c.b16 %v1118, %v1114
    %v1371 = vpack.c.b16 %v1119, %v1119
    %v1372 = vpack.c.b16 %v1120, %v1120
    %v1373 = vpack.c.b16 %v1121, %v1121
    %v1374 = vpack.c.b16 %v1122, %v1122
    %vm1623 = vcmask 850944
    %v1625 = vsel %vm1623, %v122, 0
    %vm1627 = vcmask 1043456
    %v1629 = vsel %vm1627, %v1371, 0
    %v1632 = vsel %vm1627, %v1372, 0
    %v1635 = vsel %vm1627, %v1373, 0
    %v1638 = vsel %vm1627, %v1374, 0
    %1640 = vmatprep.subr.bf16.mxu0 %v1152
    %1641 = vmatpush1.bf16.msra.mxu0 %v1151
    %1642 = vmatprep.subr.bf16.mxu0 %v1148
    %1643 = vmatpush1.bf16.msra.mxu0 %v1147
    %1644 = vmatprep.subr.bf16.mxu0 %v1144
    %1645 = vmatpush1.bf16.msra.mxu0 %v1143
    %1646 = vmatprep.subr.bf16.mxu0 %v1140
    %1647 = vmatpush1.bf16.msra.mxu0 %v1139
    %1648 = vmatprep.subr.bf16.mxu0 %v1136
    %1649 = vmatpush1.bf16.msra.mxu0 %v1135
    %1650 = vmatprep.subr.bf16.mxu0 %v1132
    %1651 = vmatpush1.bf16.msra.mxu0 %v1131
    %1652 = vmatprep.subr.bf16.mxu0 %v1128
    %1653 = vmatpush1.bf16.msra.mxu0 %v1127
    %1654 = vmatprep.subr.bf16.mxu0 %v1124
    %1655 = vmatpush1.bf16.msra.mxu0 %v1123
    %1656 = vmatprep.subr.bf16.mxu0 %v1184
    %1657 = vmatpush2.bf16.msra.mxu0 %v1183
    %1658 = vmatprep.subr.bf16.mxu0 %v1180
    %1659 = vmatpush2.bf16.msra.mxu0 %v1179
    %1660 = vmatprep.subr.bf16.mxu0 %v1176
    %1661 = vmatpush2.bf16.msra.mxu0 %v1175
    %1662 = vmatprep.subr.bf16.mxu0 %v1172
    %1663 = vmatpush2.bf16.msra.mxu0 %v1171
    %1664 = vmatprep.subr.bf16.mxu0 %v1168
    %1665 = vmatpush2.bf16.msra.mxu0 %v1167
    %1666 = vmatprep.subr.bf16.mxu0 %v1164
    %1667 = vmatpush2.bf16.msra.mxu0 %v1163
    %1668 = vmatprep.subr.bf16.mxu0 %v1160
    %1669 = vmatpush2.bf16.msra.mxu0 %v1159
    %1670 = vmatprep.subr.bf16.mxu0 %v1156
    %1671 = vmatpush2.bf16.msra.mxu0 %v1155
    %1672 = vmatprep.mubr.bf16.mxu0 %v116
    %1673 = vmatmul.mubr.bf16.gmra.mxu0 %v115
    %v1674 = vpop.f32.mrf.mxu0
    %v1675 = vadd.f32 0.0, %v1674
    %v1676 = vpop.f32.mrf.mxu0
    %v1677 = vadd.f32 0.0, %v1676
    %v1678 = vpop.f32.mrf.mxu0
    %v1679 = vpop.f32.mrf.mxu0
    %1680 = vdwg.mxu0
    %1681 = vmatprep.subr.bf16.mxu0 %v1216
    %1682 = vmatpush1.bf16.msra.mxu0 %v1215
    %1683 = vmatprep.subr.bf16.mxu0 %v1212
    %1684 = vmatpush1.bf16.msra.mxu0 %v1211
    %1685 = vmatprep.subr.bf16.mxu0 %v1208
    %1686 = vmatpush1.bf16.msra.mxu0 %v1207
    %1687 = vmatprep.subr.bf16.mxu0 %v1204
    %1688 = vmatpush1.bf16.msra.mxu0 %v1203
    %1689 = vmatprep.subr.bf16.mxu0 %v1200
    %1690 = vmatpush1.bf16.msra.mxu0 %v1199
    %1691 = vmatprep.subr.bf16.mxu0 %v1196
    %1692 = vmatpush1.bf16.msra.mxu0 %v1195
    %1693 = vmatprep.subr.bf16.mxu0 %v1192
    %1694 = vmatpush1.bf16.msra.mxu0 %v1191
    %1695 = vmatprep.subr.bf16.mxu0 %v1188
    %1696 = vmatpush1.bf16.msra.mxu0 %v1187
    %1697 = vmatprep.subr.bf16.mxu0 %v1248
    %1698 = vmatpush2.bf16.msra.mxu0 %v1247
    %1699 = vmatprep.subr.bf16.mxu0 %v1244
    %1700 = vmatpush2.bf16.msra.mxu0 %v1243
    %1701 = vmatprep.subr.bf16.mxu0 %v1240
    %1702 = vmatpush2.bf16.msra.mxu0 %v1239
    %1703 = vmatprep.subr.bf16.mxu0 %v1236
    %1704 = vmatpush2.bf16.msra.mxu0 %v1235
    %1705 = vmatprep.subr.bf16.mxu0 %v1232
    %1706 = vmatpush2.bf16.msra.mxu0 %v1231
    %1707 = vmatprep.subr.bf16.mxu0 %v1228
    %1708 = vmatpush2.bf16.msra.mxu0 %v1227
    %1709 = vmatprep.subr.bf16.mxu0 %v1224
    %1710 = vmatpush2.bf16.msra.mxu0 %v1223
    %1711 = vmatprep.subr.bf16.mxu0 %v1220
    %1712 = vmatpush2.bf16.msra.mxu0 %v1219
    %1713 = vmatprep.mubr.bf16.mxu0 %v118
    %1714 = vmatmul.mubr.bf16.gmra.mxu0 %v117
    %v1715 = vpop.f32.mrf.mxu0
    %v1716 = vadd.f32 %v1675, %v1715
    %v1717 = vpop.f32.mrf.mxu0
    %v1718 = vadd.f32 %v1677, %v1717
    %v1719 = vpop.f32.mrf.mxu0
    %v1720 = vpop.f32.mrf.mxu0
    %1721 = vdwg.mxu0
    %1722 = vmatprep.subr.bf16.mxu0 %v1280
    %1723 = vmatpush1.bf16.msra.mxu0 %v1279
    %1724 = vmatprep.subr.bf16.mxu0 %v1276
    %1725 = vmatpush1.bf16.msra.mxu0 %v1275
    %1726 = vmatprep.subr.bf16.mxu0 %v1272
    %1727 = vmatpush1.bf16.msra.mxu0 %v1271
    %1728 = vmatprep.subr.bf16.mxu0 %v1268
    %1729 = vmatpush1.bf16.msra.mxu0 %v1267
    %1730 = vmatprep.subr.bf16.mxu0 %v1264
    %1731 = vmatpush1.bf16.msra.mxu0 %v1263
    %1732 = vmatprep.subr.bf16.mxu0 %v1260
    %1733 = vmatpush1.bf16.msra.mxu0 %v1259
    %1734 = vmatprep.subr.bf16.mxu0 %v1256
    %1735 = vmatpush1.bf16.msra.mxu0 %v1255
    %1736 = vmatprep.subr.bf16.mxu0 %v1252
    %1737 = vmatpush1.bf16.msra.mxu0 %v1251
    %1738 = vmatprep.subr.bf16.mxu0 %v1312
    %1739 = vmatpush2.bf16.msra.mxu0 %v1311
    %1740 = vmatprep.subr.bf16.mxu0 %v1308
    %1741 = vmatpush2.bf16.msra.mxu0 %v1307
    %1742 = vmatprep.subr.bf16.mxu0 %v1304
    %1743 = vmatpush2.bf16.msra.mxu0 %v1303
    %1744 = vmatprep.subr.bf16.mxu0 %v1300
    %1745 = vmatpush2.bf16.msra.mxu0 %v1299
    %1746 = vmatprep.subr.bf16.mxu0 %v1296
    %1747 = vmatpush2.bf16.msra.mxu0 %v1295
    %1748 = vmatprep.subr.bf16.mxu0 %v1292
    %1749 = vmatpush2.bf16.msra.mxu0 %v1291
    %1750 = vmatprep.subr.bf16.mxu0 %v1288
    %1751 = vmatpush2.bf16.msra.mxu0 %v1287
    %1752 = vmatprep.subr.bf16.mxu0 %v1284
    %1753 = vmatpush2.bf16.msra.mxu0 %v1283
    %1754 = vmatprep.mubr.bf16.mxu0 %v120
    %1755 = vmatmul.mubr.bf16.gmra.mxu0 %v119
    %v1756 = vpop.f32.mrf.mxu0
    %v1757 = vadd.f32 %v1716, %v1756
    %v1758 = vpop.f32.mrf.mxu0
    %v1759 = vadd.f32 %v1718, %v1758
    %v1760 = vpop.f32.mrf.mxu0
    %v1761 = vpop.f32.mrf.mxu0
    %1762 = vdwg.mxu0
    %1763 = vmatprep.subr.bf16.mxu0 %v1344
    %1764 = vmatpush1.bf16.msra.mxu0 %v1343
    %1765 = vmatprep.subr.bf16.mxu0 %v1340
    %1766 = vmatpush1.bf16.msra.mxu0 %v1339
    %1767 = vmatprep.subr.bf16.mxu0 %v1336
    %1768 = vmatpush1.bf16.msra.mxu0 %v1335
    %1769 = vmatprep.subr.bf16.mxu0 %v1332
    %1770 = vmatpush1.bf16.msra.mxu0 %v1331
    %1771 = vmatprep.subr.bf16.mxu0 %v1328
    %1772 = vmatpush1.bf16.msra.mxu0 %v1327
    %1773 = vmatprep.subr.bf16.mxu0 %v1324
    %1774 = vmatpush1.bf16.msra.mxu0 %v1323
    %1775 = vmatprep.subr.bf16.mxu0 %v1320
    %1776 = vmatpush1.bf16.msra.mxu0 %v1319
    %1777 = vmatprep.subr.bf16.mxu0 %v1316
    %1778 = vmatpush1.bf16.msra.mxu0 %v1315
    %1779 = vmatprep.subr.bf16.mxu0 0
    %1780 = vmatpush2.bf16.msra.mxu0 0
    %1781 = vmatprep.subr.bf16.mxu0 %v1632
    %1782 = vmatpush2.bf16.msra.mxu0 %v1629
    %1783 = vmatprep.subr.bf16.mxu0 %v1368
    %1784 = vmatpush2.bf16.msra.mxu0 %v1367
    %1785 = vmatprep.subr.bf16.mxu0 %v1364
    %1786 = vmatpush2.bf16.msra.mxu0 %v1363
    %1787 = vmatprep.subr.bf16.mxu0 %v1360
    %1788 = vmatpush2.bf16.msra.mxu0 %v1359
    %1789 = vmatprep.subr.bf16.mxu0 %v1356
    %1790 = vmatpush2.bf16.msra.mxu0 %v1355
    %1791 = vmatprep.subr.bf16.mxu0 %v1352
    %1792 = vmatpush2.bf16.msra.mxu0 %v1351
    %1793 = vmatprep.subr.bf16.mxu0 %v1348
    %1794 = vmatpush2.bf16.msra.mxu0 %v1347
    %1795 = vmatprep.mubr.bf16.mxu0 %v1625
    %1796 = vmatmul.mubr.bf16.gmra.mxu0 %v121
    %v1797 = vpop.f32.mrf.mxu0
    %v1798 = vadd.f32 %v1757, %v1797
    %v1799 = vpop.f32.mrf.mxu0
    %v1800 = vadd.f32 %v1759, %v1799
    %v1801 = vpop.f32.mrf.mxu0
    %v1802 = vpop.f32.mrf.mxu0
    %1803 = vdwg.mxu0
    %1804 = vmatprep.subr.bf16.mxu0 %v1154
    %1805 = vmatpush1.bf16.msra.mxu0 %v1153
    %1806 = vmatprep.subr.bf16.mxu0 %v1150
    %1807 = vmatpush1.bf16.msra.mxu0 %v1149
    %1808 = vmatprep.subr.bf16.mxu0 %v1146
    %1809 = vmatpush1.bf16.msra.mxu0 %v1145
    %1810 = vmatprep.subr.bf16.mxu0 %v1142
    %1811 = vmatpush1.bf16.msra.mxu0 %v1141
    %1812 = vmatprep.subr.bf16.mxu0 %v1138
    %1813 = vmatpush1.bf16.msra.mxu0 %v1137
    %1814 = vmatprep.subr.bf16.mxu0 %v1134
    %1815 = vmatpush1.bf16.msra.mxu0 %v1133
    %1816 = vmatprep.subr.bf16.mxu0 %v1130
    %1817 = vmatpush1.bf16.msra.mxu0 %v1129
    %1818 = vmatprep.subr.bf16.mxu0 %v1126
    %1819 = vmatpush1.bf16.msra.mxu0 %v1125
    %1820 = vmatprep.subr.bf16.mxu0 %v1186
    %1821 = vmatpush2.bf16.msra.mxu0 %v1185
    %1822 = vmatprep.subr.bf16.mxu0 %v1182
    %1823 = vmatpush2.bf16.msra.mxu0 %v1181
    %1824 = vmatprep.subr.bf16.mxu0 %v1178
    %1825 = vmatpush2.bf16.msra.mxu0 %v1177
    %1826 = vmatprep.subr.bf16.mxu0 %v1174
    %1827 = vmatpush2.bf16.msra.mxu0 %v1173
    %1828 = vmatprep.subr.bf16.mxu0 %v1170
    %1829 = vmatpush2.bf16.msra.mxu0 %v1169
    %1830 = vmatprep.subr.bf16.mxu0 %v1166
    %1831 = vmatpush2.bf16.msra.mxu0 %v1165
    %1832 = vmatprep.subr.bf16.mxu0 %v1162
    %1833 = vmatpush2.bf16.msra.mxu0 %v1161
    %1834 = vmatprep.subr.bf16.mxu0 %v1158
    %1835 = vmatpush2.bf16.msra.mxu0 %v1157
    %1836 = vmatprep.mubr.bf16.mxu0 %v116
    %1837 = vmatmul.mubr.bf16.gmra.mxu0 %v115
    %v1838 = vpop.f32.mrf.mxu0
    %v1839 = vadd.f32 0.0, %v1838
    %v1840 = vpop.f32.mrf.mxu0
    %v1841 = vadd.f32 0.0, %v1840
    %v1842 = vpop.f32.mrf.mxu0
    %v1843 = vpop.f32.mrf.mxu0
    %1844 = vdwg.mxu0
    %1845 = vmatprep.subr.bf16.mxu0 %v1218
    %1846 = vmatpush1.bf16.msra.mxu0 %v1217
    %1847 = vmatprep.subr.bf16.mxu0 %v1214
    %1848 = vmatpush1.bf16.msra.mxu0 %v1213
    %1849 = vmatprep.subr.bf16.mxu0 %v1210
    %1850 = vmatpush1.bf16.msra.mxu0 %v1209
    %1851 = vmatprep.subr.bf16.mxu0 %v1206
    %1852 = vmatpush1.bf16.msra.mxu0 %v1205
    %1853 = vmatprep.subr.bf16.mxu0 %v1202
    %1854 = vmatpush1.bf16.msra.mxu0 %v1201
    %1855 = vmatprep.subr.bf16.mxu0 %v1198
    %1856 = vmatpush1.bf16.msra.mxu0 %v1197
    %1857 = vmatprep.subr.bf16.mxu0 %v1194
    %1858 = vmatpush1.bf16.msra.mxu0 %v1193
    %1859 = vmatprep.subr.bf16.mxu0 %v1190
    %1860 = vmatpush1.bf16.msra.mxu0 %v1189
    %1861 = vmatprep.subr.bf16.mxu0 %v1250
    %1862 = vmatpush2.bf16.msra.mxu0 %v1249
    %1863 = vmatprep.subr.bf16.mxu0 %v1246
    %1864 = vmatpush2.bf16.msra.mxu0 %v1245
    %1865 = vmatprep.subr.bf16.mxu0 %v1242
    %1866 = vmatpush2.bf16.msra.mxu0 %v1241
    %1867 = vmatprep.subr.bf16.mxu0 %v1238
    %1868 = vmatpush2.bf16.msra.mxu0 %v1237
    %1869 = vmatprep.subr.bf16.mxu0 %v1234
    %1870 = vmatpush2.bf16.msra.mxu0 %v1233
    %1871 = vmatprep.subr.bf16.mxu0 %v1230
    %1872 = vmatpush2.bf16.msra.mxu0 %v1229
    %1873 = vmatprep.subr.bf16.mxu0 %v1226
    %1874 = vmatpush2.bf16.msra.mxu0 %v1225
    %1875 = vmatprep.subr.bf16.mxu0 %v1222
    %1876 = vmatpush2.bf16.msra.mxu0 %v1221
    %1877 = vmatprep.mubr.bf16.mxu0 %v118
    %1878 = vmatmul.mubr.bf16.gmra.mxu0 %v117
    %v1879 = vpop.f32.mrf.mxu0
    %v1880 = vadd.f32 %v1839, %v1879
    %v1881 = vpop.f32.mrf.mxu0
    %v1882 = vadd.f32 %v1841, %v1881
    %v1883 = vpop.f32.mrf.mxu0
    %v1884 = vpop.f32.mrf.mxu0
    %1885 = vdwg.mxu0
    %1886 = vmatprep.subr.bf16.mxu0 %v1282
    %1887 = vmatpush1.bf16.msra.mxu0 %v1281
    %1888 = vmatprep.subr.bf16.mxu0 %v1278
    %1889 = vmatpush1.bf16.msra.mxu0 %v1277
    %1890 = vmatprep.subr.bf16.mxu0 %v1274
    %1891 = vmatpush1.bf16.msra.mxu0 %v1273
    %1892 = vmatprep.subr.bf16.mxu0 %v1270
    %1893 = vmatpush1.bf16.msra.mxu0 %v1269
    %1894 = vmatprep.subr.bf16.mxu0 %v1266
    %1895 = vmatpush1.bf16.msra.mxu0 %v1265
    %1896 = vmatprep.subr.bf16.mxu0 %v1262
    %1897 = vmatpush1.bf16.msra.mxu0 %v1261
    %1898 = vmatprep.subr.bf16.mxu0 %v1258
    %1899 = vmatpush1.bf16.msra.mxu0 %v1257
    %1900 = vmatprep.subr.bf16.mxu0 %v1254
    %1901 = vmatpush1.bf16.msra.mxu0 %v1253
    %1902 = vmatprep.subr.bf16.mxu0 %v1314
    %1903 = vmatpush2.bf16.msra.mxu0 %v1313
    %1904 = vmatprep.subr.bf16.mxu0 %v1310
    %1905 = vmatpush2.bf16.msra.mxu0 %v1309
    %1906 = vmatprep.subr.bf16.mxu0 %v1306
    %1907 = vmatpush2.bf16.msra.mxu0 %v1305
    %1908 = vmatprep.subr.bf16.mxu0 %v1302
    %1909 = vmatpush2.bf16.msra.mxu0 %v1301
    %1910 = vmatprep.subr.bf16.mxu0 %v1298
    %1911 = vmatpush2.bf16.msra.mxu0 %v1297
    %1912 = vmatprep.subr.bf16.mxu0 %v1294
    %1913 = vmatpush2.bf16.msra.mxu0 %v1293
    %1914 = vmatprep.subr.bf16.mxu0 %v1290
    %1915 = vmatpush2.bf16.msra.mxu0 %v1289
    %1916 = vmatprep.subr.bf16.mxu0 %v1286
    %1917 = vmatpush2.bf16.msra.mxu0 %v1285
    %1918 = vmatprep.mubr.bf16.mxu0 %v120
    %1919 = vmatmul.mubr.bf16.gmra.mxu0 %v119
    %v1920 = vpop.f32.mrf.mxu0
    %v1921 = vadd.f32 %v1880, %v1920
    %v1922 = vpop.f32.mrf.mxu0
    %v1923 = vadd.f32 %v1882, %v1922
    %v1924 = vpop.f32.mrf.mxu0
    %v1925 = vpop.f32.mrf.mxu0
    %1926 = vdwg.mxu0
    %1927 = vmatprep.subr.bf16.mxu0 %v1346
    %1928 = vmatpush1.bf16.msra.mxu0 %v1345
    %1929 = vmatprep.subr.bf16.mxu0 %v1342
    %1930 = vmatpush1.bf16.msra.mxu0 %v1341
    %1931 = vmatprep.subr.bf16.mxu0 %v1338
    %1932 = vmatpush1.bf16.msra.mxu0 %v1337
    %1933 = vmatprep.subr.bf16.mxu0 %v1334
    %1934 = vmatpush1.bf16.msra.mxu0 %v1333
    %1935 = vmatprep.subr.bf16.mxu0 %v1330
    %1936 = vmatpush1.bf16.msra.mxu0 %v1329
    %1937 = vmatprep.subr.bf16.mxu0 %v1326
    %1938 = vmatpush1.bf16.msra.mxu0 %v1325
    %1939 = vmatprep.subr.bf16.mxu0 %v1322
    %1940 = vmatpush1.bf16.msra.mxu0 %v1321
    %1941 = vmatprep.subr.bf16.mxu0 %v1318
    %1942 = vmatpush1.bf16.msra.mxu0 %v1317
    %1943 = vmatprep.subr.bf16.mxu0 0
    %1944 = vmatpush2.bf16.msra.mxu0 0
    %1945 = vmatprep.subr.bf16.mxu0 %v1638
    %1946 = vmatpush2.bf16.msra.mxu0 %v1635
    %1947 = vmatprep.subr.bf16.mxu0 %v1370
    %1948 = vmatpush2.bf16.msra.mxu0 %v1369
    %1949 = vmatprep.subr.bf16.mxu0 %v1366
    %1950 = vmatpush2.bf16.msra.mxu0 %v1365
    %1951 = vmatprep.subr.bf16.mxu0 %v1362
    %1952 = vmatpush2.bf16.msra.mxu0 %v1361
    %1953 = vmatprep.subr.bf16.mxu0 %v1358
    %1954 = vmatpush2.bf16.msra.mxu0 %v1357
    %1955 = vmatprep.subr.bf16.mxu0 %v1354
    %1956 = vmatpush2.bf16.msra.mxu0 %v1353
    %1957 = vmatprep.subr.bf16.mxu0 %v1350
    %1958 = vmatpush2.bf16.msra.mxu0 %v1349
    %1959 = vmatprep.mubr.bf16.mxu0 %v1625
    %1960 = vmatmul.mubr.bf16.gmra.mxu0 %v121
    %v1961 = vpop.f32.mrf.mxu0
    %v1962 = vadd.f32 %v1921, %v1961
    %v1963 = vpop.f32.mrf.mxu0
    %v1964 = vadd.f32 %v1923, %v1963
    %v1965 = vpop.f32.mrf.mxu0
    %v1966 = vpop.f32.mrf.mxu0
    %1967 = vdwg.mxu0
    %v1968 = vpack.c.bf16 %v1798, %v1798
    %v1969 = vpack.c.bf16 %v1800, %v1800
    %v1970 = vpack.c.bf16 %v1962, %v1962
    %v1971 = vpack.c.bf16 %v1964, %v1964
    %v1972 = vld [vmem:[#allocation8] sm:$0xff]
    %v1973 = vld [vmem:[#allocation8 + $0x8] sm:$0xff]
    %v1974 = vld [vmem:[#allocation8 + $0x10] sm:$0xff]
    %v1975 = vld [vmem:[#allocation8 + $0x18] sm:$0xff]
    %v1976 = vld [vmem:[#allocation8 + $0x20] sm:$0xff]
    %v1977 = vld [vmem:[#allocation8 + $0x28] sm:$0xff]
    %v1978 = vld [vmem:[#allocation8 + $0x30] sm:$0xff]
    %v1979 = vld [vmem:[#allocation8 + $0x38] sm:$0xff]
    %v1980 = vld [vmem:[#allocation8 + $0x40] sm:$0xff]
    %v1981 = vld [vmem:[#allocation8 + $0x48] sm:$0xff]
    %v1982 = vld [vmem:[#allocation8 + $0x50] sm:$0xff]
    %v1983 = vld [vmem:[#allocation8 + $0x58] sm:$0xff]
    %v1984 = vld [vmem:[#allocation8 + $0x60] sm:$0xff]
    %v1985 = vld [vmem:[#allocation8 + $0x68] sm:$0xff]
    %v1986 = vld [vmem:[#allocation8 + $0x70] sm:$0xff]
    %v1987 = vld [vmem:[#allocation8 + $0x78] sm:$0xff]
    %v1988 = vld [vmem:[#allocation8 + $0x80] sm:$0xff]
    %v1989 = vld [vmem:[#allocation8 + $0x88] sm:$0xff]
    %v1990 = vld [vmem:[#allocation8 + $0x90] sm:$0xff]
    %v1991 = vld [vmem:[#allocation8 + $0x98] sm:$0xff]
    %v1992 = vld [vmem:[#allocation8 + $0xa0] sm:$0xff]
    %v1993 = vld [vmem:[#allocation8 + $0xa8] sm:$0xff]
    %v1994 = vld [vmem:[#allocation8 + $0xb0] sm:$0xff]
    %v1995 = vld [vmem:[#allocation8 + $0xb8] sm:$0xff]
    %v1996 = vld [vmem:[#allocation8 + $0xc0] sm:$0xff]
    %v1997 = vld [vmem:[#allocation8 + $0xc8] sm:$0xff]
    %v1998 = vld [vmem:[#allocation8 + $0xd0] sm:$0xff]
    %v1999 = vld [vmem:[#allocation8 + $0xd8] sm:$0xff]
    %v2000 = vld [vmem:[#allocation8 + $0xe0] sm:$0xff]
    %v2001 = vld [vmem:[#allocation8 + $0xe8] sm:$0xff]
    %v2002 = vld [vmem:[#allocation8 + $0xf0] sm:$0xff]
    %v2003 = vld [vmem:[#allocation8 + $0xf8] sm:$0xff]
    %v2004 = vld [vmem:[#allocation8 + $0x100] sm:$0xff]
    %v2005 = vld [vmem:[#allocation8 + $0x108] sm:$0xff]
    %v2006 = vld [vmem:[#allocation8 + $0x110] sm:$0xff]
    %v2007 = vld [vmem:[#allocation8 + $0x118] sm:$0xff]
    %v2008 = vld [vmem:[#allocation8 + $0x120] sm:$0xff]
    %v2009 = vld [vmem:[#allocation8 + $0x128] sm:$0xff]
    %v2010 = vld [vmem:[#allocation8 + $0x130] sm:$0xff]
    %v2011 = vld [vmem:[#allocation8 + $0x138] sm:$0xff]
    %v2012 = vld [vmem:[#allocation8 + $0x140] sm:$0xff]
    %v2013 = vld [vmem:[#allocation8 + $0x148] sm:$0xff]
    %v2014 = vld [vmem:[#allocation8 + $0x150] sm:$0xff]
    %v2015 = vld [vmem:[#allocation8 + $0x158] sm:$0xff]
    %v2016 = vld [vmem:[#allocation8 + $0x160] sm:$0xff]
    %v2017 = vld [vmem:[#allocation8 + $0x168] sm:$0xff]
    %v2018 = vld [vmem:[#allocation8 + $0x170] sm:$0xff]
    %v2019 = vld [vmem:[#allocation8 + $0x178] sm:$0xff]
    %v2020 = vld [vmem:[#allocation8 + $0x180] sm:$0xff]
    %v2021 = vld [vmem:[#allocation8 + $0x188] sm:$0xff]
    %v2022 = vld [vmem:[#allocation8 + $0x190] sm:$0xff]
    %v2023 = vld [vmem:[#allocation8 + $0x198] sm:$0xff]
    %v2024 = vld [vmem:[#allocation8 + $0x1a0] sm:$0xff]
    %v2025 = vld [vmem:[#allocation8 + $0x1a8] sm:$0xff]
    %v2026 = vld [vmem:[#allocation8 + $0x1b0] sm:$0xff]
    %v2027 = vld [vmem:[#allocation8 + $0x1b8] sm:$0xff]
    %v2028 = vld [vmem:[#allocation8 + $0x1c0] sm:$0xff]
    %v2029 = vld [vmem:[#allocation8 + $0x1c8] sm:$0xff]
    %v2030 = vld [vmem:[#allocation8 + $0x1d0] sm:$0xff]
    %v2031 = vld [vmem:[#allocation8 + $0x1d8] sm:$0xff]
    %v2032 = vld [vmem:[#allocation8 + $0x1e0] sm:$0xff]
    %v2033 = vld [vmem:[#allocation8 + $0x1e8] sm:$0xff]
    %v2034 = vld [vmem:[#allocation8 + $0x1f0] sm:$0xff]
    %v2035 = vld [vmem:[#allocation8 + $0x1f8] sm:$0xff]
    %v2036 = vld [vmem:[#allocation5] sm:$0xff]
    %v2037 = vld [vmem:[#allocation10] sm:$0xff]
    %v2038 = vld [vmem:[#allocation10 + $0x8] sm:$0xff]
    %vm2039 = vcmask 64512
    %v2041 = vsel %vm2039, %v2036, 0
    %2043 = vmatprep.subr.mxu0 0.0
    %2044 = vmatpush1.msra.mxu0 0.0
    %2045 = vmatprep.subr.mxu0 0.0
    %2046 = vmatpush1.msra.mxu0 0.0
    %2047 = vmatprep.subr.mxu0 0.0
    %2048 = vmatpush1.msra.mxu0 0.0
    %2049 = vmatprep.subr.mxu0 0.0
    %2050 = vmatpush1.msra.mxu0 0.0
    %2051 = vmatprep.subr.mxu0 0.0
    %2052 = vmatpush1.msra.mxu0 0.0
    %2053 = vmatprep.subr.mxu0 0.0
    %2054 = vmatpush1.msra.mxu0 0.0
    %2055 = vmatprep.subr.mxu0 0.0
    %2056 = vmatpush1.msra.mxu0 0.0
    %2057 = vmatprep.subr.mxu0 0.0
    %2058 = vmatpush1.msra.mxu0 0.0
    %2059 = vmatprep.subr.mxu0 0.0
    %2060 = vmatpush1.msra.mxu0 0.0
    %2061 = vmatprep.subr.mxu0 0.0
    %2062 = vmatpush1.msra.mxu0 0.0
    %2063 = vmatprep.subr.mxu0 0.0
    %2064 = vmatpush1.msra.mxu0 0.0
    %2065 = vmatprep.subr.mxu0 0.0
    %2066 = vmatpush1.msra.mxu0 0.0
    %2067 = vmatprep.subr.mxu0 0.0
    %2068 = vmatpush1.msra.mxu0 0.0
    %2069 = vmatprep.subr.mxu0 0.0
    %2070 = vmatpush1.msra.mxu0 0.0
    %2071 = vmatprep.subr.mxu0 0.0
    %2072 = vmatpush1.msra.mxu0 0.0
    %2073 = vmatprep.subr.mxu0 %v2038
    %2074 = vmatpush1.msra.mxu0 %v2037
    %2075 = vmatprep.subr.mxu0 0.0
    %2076 = vmatpush2.msra.mxu0 0.0
    %2077 = vmatprep.subr.mxu0 0.0
    %2078 = vmatpush2.msra.mxu0 0.0
    %2079 = vmatprep.subr.mxu0 0.0
    %2080 = vmatpush2.msra.mxu0 0.0
    %2081 = vmatprep.subr.mxu0 0.0
    %2082 = vmatpush2.msra.mxu0 0.0
    %2083 = vmatprep.subr.mxu0 0.0
    %2084 = vmatpush2.msra.mxu0 0.0
    %2085 = vmatprep.subr.mxu0 0.0
    %2086 = vmatpush2.msra.mxu0 0.0
    %2087 = vmatprep.subr.mxu0 0.0
    %2088 = vmatpush2.msra.mxu0 0.0
    %2089 = vmatprep.subr.mxu0 0.0
    %2090 = vmatpush2.msra.mxu0 0.0
    %2091 = vmatprep.subr.mxu0 0.0
    %2092 = vmatpush2.msra.mxu0 0.0
    %2093 = vmatprep.subr.mxu0 0.0
    %2094 = vmatpush2.msra.mxu0 0.0
    %2095 = vmatprep.subr.mxu0 0.0
    %2096 = vmatpush2.msra.mxu0 0.0
    %2097 = vmatprep.subr.mxu0 0.0
    %2098 = vmatpush2.msra.mxu0 0.0
    %2099 = vmatprep.subr.mxu0 0.0
    %2100 = vmatpush2.msra.mxu0 0.0
    %2101 = vmatprep.subr.mxu0 0.0
    %2102 = vmatpush2.msra.mxu0 0.0
    %2103 = vmatprep.subr.mxu0 0.0
    %2104 = vmatpush2.msra.mxu0 0.0
    %2105 = vmatprep.subr.mxu0 0.0
    %2106 = vmatpush2.msra.mxu0 0.0
    %2107 = vmatprep.mubr.f32.mxu0 0.0
    %2108 = vmatmul.mubr.f32.gmra.mxu0 %v2041
    %v2109 = vpop.f32.mrf.mxu0
    %v2110 = vadd.f32 0.0, %v2109
    %v2111 = vpop.f32.mrf.mxu0
    %v2112 = vadd.f32 0.0, %v2111
    %2113 = vdwg.mxu0
    %v2178 = vunpack.c.l.b16 %v1972
    %v2179 = vunpack.c.h.b16 %v1972
    %v2180 = vunpack.c.l.b16 %v1973
    %v2181 = vunpack.c.h.b16 %v1973
    %v2182 = vunpack.c.l.b16 %v1974
    %v2183 = vunpack.c.h.b16 %v1974
    %v2184 = vunpack.c.l.b16 %v1975
    %v2185 = vunpack.c.h.b16 %v1975
    %v2186 = vunpack.c.l.b16 %v1976
    %v2187 = vunpack.c.h.b16 %v1976
    %v2188 = vunpack.c.l.b16 %v1977
    %v2189 = vunpack.c.h.b16 %v1977
    %v2190 = vunpack.c.l.b16 %v1978
    %v2191 = vunpack.c.h.b16 %v1978
    %v2192 = vunpack.c.l.b16 %v1979
    %v2193 = vunpack.c.h.b16 %v1979
    %v2194 = vunpack.c.l.b16 %v1980
    %v2195 = vunpack.c.h.b16 %v1980
    %v2196 = vunpack.c.l.b16 %v1981
    %v2197 = vunpack.c.h.b16 %v1981
    %v2198 = vunpack.c.l.b16 %v1982
    %v2199 = vunpack.c.h.b16 %v1982
    %v2200 = vunpack.c.l.b16 %v1983
    %v2201 = vunpack.c.h.b16 %v1983
    %v2202 = vunpack.c.l.b16 %v1984
    %v2203 = vunpack.c.h.b16 %v1984
    %v2204 = vunpack.c.l.b16 %v1985
    %v2205 = vunpack.c.h.b16 %v1985
    %v2206 = vunpack.c.l.b16 %v1986
    %v2207 = vunpack.c.h.b16 %v1986
    %v2208 = vunpack.c.l.b16 %v1987
    %v2209 = vunpack.c.h.b16 %v1987
    %v2210 = vunpack.c.l.b16 %v1988
    %v2211 = vunpack.c.h.b16 %v1988
    %v2212 = vunpack.c.l.b16 %v1989
    %v2213 = vunpack.c.h.b16 %v1989
    %v2214 = vunpack.c.l.b16 %v1990
    %v2215 = vunpack.c.h.b16 %v1990
    %v2216 = vunpack.c.l.b16 %v1991
    %v2217 = vunpack.c.h.b16 %v1991
    %v2218 = vunpack.c.l.b16 %v1992
    %v2219 = vunpack.c.h.b16 %v1992
    %v2220 = vunpack.c.l.b16 %v1993
    %v2221 = vunpack.c.h.b16 %v1993
    %v2222 = vunpack.c.l.b16 %v1994
    %v2223 = vunpack.c.h.b16 %v1994
    %v2224 = vunpack.c.l.b16 %v1995
    %v2225 = vunpack.c.h.b16 %v1995
    %v2226 = vunpack.c.l.b16 %v1996
    %v2227 = vunpack.c.h.b16 %v1996
    %v2228 = vunpack.c.l.b16 %v1997
    %v2229 = vunpack.c.h.b16 %v1997
    %v2230 = vunpack.c.l.b16 %v1998
    %v2231 = vunpack.c.h.b16 %v1998
    %v2232 = vunpack.c.l.b16 %v1999
    %v2233 = vunpack.c.h.b16 %v1999
    %v2234 = vunpack.c.l.b16 %v2000
    %v2235 = vunpack.c.h.b16 %v2000
    %v2236 = vunpack.c.l.b16 %v2001
    %v2237 = vunpack.c.h.b16 %v2001
    %v2238 = vunpack.c.l.b16 %v2002
    %v2239 = vunpack.c.h.b16 %v2002
    %v2240 = vunpack.c.l.b16 %v2003
    %v2241 = vunpack.c.h.b16 %v2003
    %v2242 = vunpack.c.l.b16 %v2004
    %v2243 = vunpack.c.h.b16 %v2004
    %v2244 = vunpack.c.l.b16 %v2005
    %v2245 = vunpack.c.h.b16 %v2005
    %v2246 = vunpack.c.l.b16 %v2006
    %v2247 = vunpack.c.h.b16 %v2006
    %v2248 = vunpack.c.l.b16 %v2007
    %v2249 = vunpack.c.h.b16 %v2007
    %v2250 = vunpack.c.l.b16 %v2008
    %v2251 = vunpack.c.h.b16 %v2008
    %v2252 = vunpack.c.l.b16 %v2009
    %v2253 = vunpack.c.h.b16 %v2009
    %v2254 = vunpack.c.l.b16 %v2010
    %v2255 = vunpack.c.h.b16 %v2010
    %v2256 = vunpack.c.l.b16 %v2011
    %v2257 = vunpack.c.h.b16 %v2011
    %v2258 = vunpack.c.l.b16 %v2012
    %v2259 = vunpack.c.h.b16 %v2012
    %v2260 = vunpack.c.l.b16 %v2013
    %v2261 = vunpack.c.h.b16 %v2013
    %v2262 = vunpack.c.l.b16 %v2014
    %v2263 = vunpack.c.h.b16 %v2014
    %v2264 = vunpack.c.l.b16 %v2015
    %v2265 = vunpack.c.h.b16 %v2015
    %v2266 = vunpack.c.l.b16 %v2016
    %v2267 = vunpack.c.h.b16 %v2016
    %v2268 = vunpack.c.l.b16 %v2017
    %v2269 = vunpack.c.h.b16 %v2017
    %v2270 = vunpack.c.l.b16 %v2018
    %v2271 = vunpack.c.h.b16 %v2018
    %v2272 = vunpack.c.l.b16 %v2019
    %v2273 = vunpack.c.h.b16 %v2019
    %v2274 = vunpack.c.l.b16 %v2020
    %v2275 = vunpack.c.h.b16 %v2020
    %v2276 = vunpack.c.l.b16 %v2021
    %v2277 = vunpack.c.h.b16 %v2021
    %v2278 = vunpack.c.l.b16 %v2022
    %v2279 = vunpack.c.h.b16 %v2022
    %v2280 = vunpack.c.l.b16 %v2023
    %v2281 = vunpack.c.h.b16 %v2023
    %v2282 = vunpack.c.l.b16 %v2024
    %v2283 = vunpack.c.h.b16 %v2024
    %v2284 = vunpack.c.l.b16 %v2025
    %v2285 = vunpack.c.h.b16 %v2025
    %v2286 = vunpack.c.l.b16 %v2026
    %v2287 = vunpack.c.h.b16 %v2026
    %v2288 = vunpack.c.l.b16 %v2027
    %v2289 = vunpack.c.h.b16 %v2027
    %v2290 = vunpack.c.l.b16 %v2028
    %v2291 = vunpack.c.h.b16 %v2028
    %v2292 = vunpack.c.l.b16 %v2029
    %v2293 = vunpack.c.h.b16 %v2029
    %v2294 = vunpack.c.l.b16 %v2030
    %v2295 = vunpack.c.h.b16 %v2030
    %v2296 = vunpack.c.l.b16 %v2031
    %v2297 = vunpack.c.h.b16 %v2031
    %v2298 = vunpack.c.l.b16 %v2032
    %v2299 = vunpack.c.h.b16 %v2032
    %v2300 = vunpack.c.l.b16 %v2033
    %v2301 = vunpack.c.h.b16 %v2033
    %v2302 = vunpack.c.l.b16 %v2034
    %v2303 = vunpack.c.h.b16 %v2034
    %v2304 = vunpack.c.l.b16 %v2035
    %v2305 = vunpack.c.h.b16 %v2035
    %v2306 = vpack.c.b16 %v2180, %v2178
    %v2307 = vpack.c.b16 %v2181, %v2179
    %v2308 = vpack.c.b16 %v2184, %v2182
    %v2309 = vpack.c.b16 %v2185, %v2183
    %v2310 = vpack.c.b16 %v2188, %v2186
    %v2311 = vpack.c.b16 %v2189, %v2187
    %v2312 = vpack.c.b16 %v2192, %v2190
    %v2313 = vpack.c.b16 %v2193, %v2191
    %v2314 = vpack.c.b16 %v2196, %v2194
    %v2315 = vpack.c.b16 %v2197, %v2195
    %v2316 = vpack.c.b16 %v2200, %v2198
    %v2317 = vpack.c.b16 %v2201, %v2199
    %v2318 = vpack.c.b16 %v2204, %v2202
    %v2319 = vpack.c.b16 %v2205, %v2203
    %v2320 = vpack.c.b16 %v2208, %v2206
    %v2321 = vpack.c.b16 %v2209, %v2207
    %v2322 = vpack.c.b16 %v2212, %v2210
    %v2323 = vpack.c.b16 %v2213, %v2211
    %v2324 = vpack.c.b16 %v2216, %v2214
    %v2325 = vpack.c.b16 %v2217, %v2215
    %v2326 = vpack.c.b16 %v2220, %v2218
    %v2327 = vpack.c.b16 %v2221, %v2219
    %v2328 = vpack.c.b16 %v2224, %v2222
    %v2329 = vpack.c.b16 %v2225, %v2223
    %v2330 = vpack.c.b16 %v2228, %v2226
    %v2331 = vpack.c.b16 %v2229, %v2227
    %v2332 = vpack.c.b16 %v2232, %v2230
    %v2333 = vpack.c.b16 %v2233, %v2231
    %v2334 = vpack.c.b16 %v2236, %v2234
    %v2335 = vpack.c.b16 %v2237, %v2235
    %v2336 = vpack.c.b16 %v2240, %v2238
    %v2337 = vpack.c.b16 %v2241, %v2239
    %v2338 = vpack.c.b16 %v2244, %v2242
    %v2339 = vpack.c.b16 %v2245, %v2243
    %v2340 = vpack.c.b16 %v2248, %v2246
    %v2341 = vpack.c.b16 %v2249, %v2247
    %v2342 = vpack.c.b16 %v2252, %v2250
    %v2343 = vpack.c.b16 %v2253, %v2251
    %v2344 = vpack.c.b16 %v2256, %v2254
    %v2345 = vpack.c.b16 %v2257, %v2255
    %v2346 = vpack.c.b16 %v2260, %v2258
    %v2347 = vpack.c.b16 %v2261, %v2259
    %v2348 = vpack.c.b16 %v2264, %v2262
    %v2349 = vpack.c.b16 %v2265, %v2263
    %v2350 = vpack.c.b16 %v2268, %v2266
    %v2351 = vpack.c.b16 %v2269, %v2267
    %v2352 = vpack.c.b16 %v2272, %v2270
    %v2353 = vpack.c.b16 %v2273, %v2271
    %v2354 = vpack.c.b16 %v2276, %v2274
    %v2355 = vpack.c.b16 %v2277, %v2275
    %v2356 = vpack.c.b16 %v2280, %v2278
    %v2357 = vpack.c.b16 %v2281, %v2279
    %v2358 = vpack.c.b16 %v2284, %v2282
    %v2359 = vpack.c.b16 %v2285, %v2283
    %v2360 = vpack.c.b16 %v2288, %v2286
    %v2361 = vpack.c.b16 %v2289, %v2287
    %v2362 = vpack.c.b16 %v2292, %v2290
    %v2363 = vpack.c.b16 %v2293, %v2291
    %v2364 = vpack.c.b16 %v2296, %v2294
    %v2365 = vpack.c.b16 %v2297, %v2295
    %v2366 = vpack.c.b16 %v2300, %v2298
    %v2367 = vpack.c.b16 %v2301, %v2299
    %v2368 = vpack.c.b16 %v2304, %v2302
    %v2369 = vpack.c.b16 %v2305, %v2303
    %2434 = vmatprep.subr.bf16.mxu0 %v2321
    %2435 = vmatpush1.bf16.msra.mxu0 %v2320
    %2436 = vmatprep.subr.bf16.mxu0 %v2319
    %2437 = vmatpush1.bf16.msra.mxu0 %v2318
    %2438 = vmatprep.subr.bf16.mxu0 %v2317
    %2439 = vmatpush1.bf16.msra.mxu0 %v2316
    %2440 = vmatprep.subr.bf16.mxu0 %v2315
    %2441 = vmatpush1.bf16.msra.mxu0 %v2314
    %2442 = vmatprep.subr.bf16.mxu0 %v2313
    %2443 = vmatpush1.bf16.msra.mxu0 %v2312
    %2444 = vmatprep.subr.bf16.mxu0 %v2311
    %2445 = vmatpush1.bf16.msra.mxu0 %v2310
    %2446 = vmatprep.subr.bf16.mxu0 %v2309
    %2447 = vmatpush1.bf16.msra.mxu0 %v2308
    %2448 = vmatprep.subr.bf16.mxu0 %v2307
    %2449 = vmatpush1.bf16.msra.mxu0 %v2306
    %2450 = vmatprep.subr.bf16.mxu0 %v2337
    %2451 = vmatpush2.bf16.msra.mxu0 %v2336
    %2452 = vmatprep.subr.bf16.mxu0 %v2335
    %2453 = vmatpush2.bf16.msra.mxu0 %v2334
    %2454 = vmatprep.subr.bf16.mxu0 %v2333
    %2455 = vmatpush2.bf16.msra.mxu0 %v2332
    %2456 = vmatprep.subr.bf16.mxu0 %v2331
    %2457 = vmatpush2.bf16.msra.mxu0 %v2330
    %2458 = vmatprep.subr.bf16.mxu0 %v2329
    %2459 = vmatpush2.bf16.msra.mxu0 %v2328
    %2460 = vmatprep.subr.bf16.mxu0 %v2327
    %2461 = vmatpush2.bf16.msra.mxu0 %v2326
    %2462 = vmatprep.subr.bf16.mxu0 %v2325
    %2463 = vmatpush2.bf16.msra.mxu0 %v2324
    %2464 = vmatprep.subr.bf16.mxu0 %v2323
    %2465 = vmatpush2.bf16.msra.mxu0 %v2322
    %2466 = vmatprep.mubr.bf16.mxu0 %v1969
    %2467 = vmatmul.mubr.bf16.gmra.mxu0 %v1968
    %v2468 = vpop.f32.mrf.mxu0
    %v2469 = vadd.f32 %v2110, %v2468
    %v2470 = vpop.f32.mrf.mxu0
    %v2471 = vadd.f32 %v2112, %v2470
    %v2472 = vpop.f32.mrf.mxu0
    %v2473 = vpop.f32.mrf.mxu0
    %2474 = vdwg.mxu0
    %2475 = vmatprep.subr.bf16.mxu0 %v2353
    %2476 = vmatpush1.bf16.msra.mxu0 %v2352
    %2477 = vmatprep.subr.bf16.mxu0 %v2351
    %2478 = vmatpush1.bf16.msra.mxu0 %v2350
    %2479 = vmatprep.subr.bf16.mxu0 %v2349
    %2480 = vmatpush1.bf16.msra.mxu0 %v2348
    %2481 = vmatprep.subr.bf16.mxu0 %v2347
    %2482 = vmatpush1.bf16.msra.mxu0 %v2346
    %2483 = vmatprep.subr.bf16.mxu0 %v2345
    %2484 = vmatpush1.bf16.msra.mxu0 %v2344
    %2485 = vmatprep.subr.bf16.mxu0 %v2343
    %2486 = vmatpush1.bf16.msra.mxu0 %v2342
    %2487 = vmatprep.subr.bf16.mxu0 %v2341
    %2488 = vmatpush1.bf16.msra.mxu0 %v2340
    %2489 = vmatprep.subr.bf16.mxu0 %v2339
    %2490 = vmatpush1.bf16.msra.mxu0 %v2338
    %2491 = vmatprep.subr.bf16.mxu0 %v2369
    %2492 = vmatpush2.bf16.msra.mxu0 %v2368
    %2493 = vmatprep.subr.bf16.mxu0 %v2367
    %2494 = vmatpush2.bf16.msra.mxu0 %v2366
    %2495 = vmatprep.subr.bf16.mxu0 %v2365
    %2496 = vmatpush2.bf16.msra.mxu0 %v2364
    %2497 = vmatprep.subr.bf16.mxu0 %v2363
    %2498 = vmatpush2.bf16.msra.mxu0 %v2362
    %2499 = vmatprep.subr.bf16.mxu0 %v2361
    %2500 = vmatpush2.bf16.msra.mxu0 %v2360
    %2501 = vmatprep.subr.bf16.mxu0 %v2359
    %2502 = vmatpush2.bf16.msra.mxu0 %v2358
    %2503 = vmatprep.subr.bf16.mxu0 %v2357
    %2504 = vmatpush2.bf16.msra.mxu0 %v2356
    %2505 = vmatprep.subr.bf16.mxu0 %v2355
    %2506 = vmatpush2.bf16.msra.mxu0 %v2354
    %2507 = vmatprep.mubr.bf16.mxu0 %v1971
    %2508 = vmatmul.mubr.bf16.gmra.mxu0 %v1970
    %v2509 = vpop.f32.mrf.mxu0
    %v2510 = vadd.f32 %v2469, %v2509
    %v2511 = vpop.f32.mrf.mxu0
    %v2512 = vadd.f32 %v2471, %v2511
    %v2513 = vpop.f32.mrf.mxu0
    %v2514 = vpop.f32.mrf.mxu0
    %2515 = vdwg.mxu0
    %v2516 = vld [vmem:[%s5] sm:$0x3]
    %v2518 = vlaneseq
    %v2519 = vshrl.u32 %v2518, 7
    %v2520 = vsub.s32 0, %v2519
    %v2521 = vrot.slane %v2516, %v2520
    %v2522 = vlaneseq
    %v2523 = vshrl.u32 %v2522, 7
    %v2524 = vsub.s32 1, %v2523
    %v2525 = vrot.slane %v2516, %v2524
    %v2528 = vadd.f32 %v2510, %v2521
    %v2529 = vadd.f32 %v2512, %v2525
    %v2530 = vmax.f32 %v2528, 0.0
    %v2531 = vmax.f32 %v2529, 0.0
    %v2532 = vpack.c.bf16 %v2530, %v2530
    %v2533 = vpack.c.bf16 %v2531, %v2531
    %v2534 = vld [vmem:[#allocation11] sm:$0xf]
    %v2535 = vld [vmem:[#allocation11 + $0x4] sm:$0xf]
    %v2536 = vld [vmem:[#allocation11 + $0x8] sm:$0xf]
    %v2537 = vld [vmem:[#allocation11 + $0xc] sm:$0xf]
    %v2538 = vld [vmem:[#allocation11 + $0x10] sm:$0xf]
    %v2539 = vld [vmem:[#allocation11 + $0x14] sm:$0xf]
    %v2540 = vld [vmem:[#allocation11 + $0x18] sm:$0xf]
    %v2541 = vld [vmem:[#allocation11 + $0x1c] sm:$0xf]
    %v2542 = vld [vmem:[#allocation11 + $0x20] sm:$0xf]
    %v2543 = vld [vmem:[#allocation11 + $0x24] sm:$0xf]
    %v2544 = vld [vmem:[#allocation11 + $0x28] sm:$0xf]
    %v2545 = vld [vmem:[#allocation11 + $0x2c] sm:$0xf]
    %v2546 = vld [vmem:[#allocation11 + $0x30] sm:$0xf]
    %v2547 = vld [vmem:[#allocation11 + $0x34] sm:$0xf]
    %v2548 = vld [vmem:[#allocation11 + $0x38] sm:$0xf]
    %v2549 = vld [vmem:[#allocation11 + $0x3c] sm:$0xf]
    %v2550 = vld [vmem:[#allocation11 + $0x40] sm:$0xf]
    %v2551 = vld [vmem:[#allocation11 + $0x44] sm:$0xf]
    %v2552 = vld [vmem:[#allocation11 + $0x48] sm:$0xf]
    %v2553 = vld [vmem:[#allocation11 + $0x4c] sm:$0xf]
    %v2554 = vld [vmem:[#allocation11 + $0x50] sm:$0xf]
    %v2555 = vld [vmem:[#allocation11 + $0x54] sm:$0xf]
    %v2556 = vld [vmem:[#allocation11 + $0x58] sm:$0xf]
    %v2557 = vld [vmem:[#allocation11 + $0x5c] sm:$0xf]
    %v2558 = vld [vmem:[#allocation11 + $0x60] sm:$0xf]
    %v2559 = vld [vmem:[#allocation11 + $0x64] sm:$0xf]
    %v2560 = vld [vmem:[#allocation11 + $0x68] sm:$0xf]
    %v2561 = vld [vmem:[#allocation11 + $0x6c] sm:$0xf]
    %v2562 = vld [vmem:[#allocation11 + $0x70] sm:$0xf]
    %v2563 = vld [vmem:[#allocation11 + $0x74] sm:$0xf]
    %v2564 = vld [vmem:[#allocation11 + $0x78] sm:$0xf]
    %v2565 = vld [vmem:[#allocation11 + $0x7c] sm:$0xf]
    %v2566 = vld [vmem:[%s7] sm:$0x1]
    %v2568 = vlaneseq
    %v2569 = vshrl.u32 %v2568, 7
    %v2570 = vsub.s32 0, %v2569
    %v2571 = vrot.slane %v2566, %v2570
    %v2605 = vunpack.c.l.b16 %v2534
    %v2606 = vunpack.c.l.b16 %v2535
    %v2607 = vunpack.c.l.b16 %v2536
    %v2608 = vunpack.c.l.b16 %v2537
    %v2609 = vunpack.c.l.b16 %v2538
    %v2610 = vunpack.c.l.b16 %v2539
    %v2611 = vunpack.c.l.b16 %v2540
    %v2612 = vunpack.c.l.b16 %v2541
    %v2613 = vunpack.c.l.b16 %v2542
    %v2614 = vunpack.c.l.b16 %v2543
    %v2615 = vunpack.c.l.b16 %v2544
    %v2616 = vunpack.c.l.b16 %v2545
    %v2617 = vunpack.c.l.b16 %v2546
    %v2618 = vunpack.c.l.b16 %v2547
    %v2619 = vunpack.c.l.b16 %v2548
    %v2620 = vunpack.c.l.b16 %v2549
    %v2621 = vunpack.c.l.b16 %v2550
    %v2622 = vunpack.c.l.b16 %v2551
    %v2623 = vunpack.c.l.b16 %v2552
    %v2624 = vunpack.c.l.b16 %v2553
    %v2625 = vunpack.c.l.b16 %v2554
    %v2626 = vunpack.c.l.b16 %v2555
    %v2627 = vunpack.c.l.b16 %v2556
    %v2628 = vunpack.c.l.b16 %v2557
    %v2629 = vunpack.c.l.b16 %v2558
    %v2630 = vunpack.c.l.b16 %v2559
    %v2631 = vunpack.c.l.b16 %v2560
    %v2632 = vunpack.c.l.b16 %v2561
    %v2633 = vunpack.c.l.b16 %v2562
    %v2634 = vunpack.c.l.b16 %v2563
    %v2635 = vunpack.c.l.b16 %v2564
    %v2636 = vunpack.c.l.b16 %v2565
    %v2637 = vpack.c.b16 %v2606, %v2605
    %v2638 = vpack.c.b16 %v2608, %v2607
    %v2639 = vpack.c.b16 %v2610, %v2609
    %v2640 = vpack.c.b16 %v2612, %v2611
    %v2641 = vpack.c.b16 %v2614, %v2613
    %v2642 = vpack.c.b16 %v2616, %v2615
    %v2643 = vpack.c.b16 %v2618, %v2617
    %v2644 = vpack.c.b16 %v2620, %v2619
    %v2645 = vpack.c.b16 %v2622, %v2621
    %v2646 = vpack.c.b16 %v2624, %v2623
    %v2647 = vpack.c.b16 %v2626, %v2625
    %v2648 = vpack.c.b16 %v2628, %v2627
    %v2649 = vpack.c.b16 %v2630, %v2629
    %v2650 = vpack.c.b16 %v2632, %v2631
    %v2651 = vpack.c.b16 %v2634, %v2633
    %v2652 = vpack.c.b16 %v2636, %v2635
    %2669 = vmatprep.subr.bf16.mxu0 0
    %2670 = vmatpush1.bf16.msra.mxu0 %v2644
    %2671 = vmatprep.subr.bf16.mxu0 0
    %2672 = vmatpush1.bf16.msra.mxu0 %v2643
    %2673 = vmatprep.subr.bf16.mxu0 0
    %2674 = vmatpush1.bf16.msra.mxu0 %v2642
    %2675 = vmatprep.subr.bf16.mxu0 0
    %2676 = vmatpush1.bf16.msra.mxu0 %v2641
    %2677 = vmatprep.subr.bf16.mxu0 0
    %2678 = vmatpush1.bf16.msra.mxu0 %v2640
    %2679 = vmatprep.subr.bf16.mxu0 0
    %2680 = vmatpush1.bf16.msra.mxu0 %v2639
    %2681 = vmatprep.subr.bf16.mxu0 0
    %2682 = vmatpush1.bf16.msra.mxu0 %v2638
    %2683 = vmatprep.subr.bf16.mxu0 0
    %2684 = vmatpush1.bf16.msra.mxu0 %v2637
    %2685 = vmatprep.subr.bf16.mxu0 0
    %2686 = vmatpush2.bf16.msra.mxu0 %v2652
    %2687 = vmatprep.subr.bf16.mxu0 0
    %2688 = vmatpush2.bf16.msra.mxu0 %v2651
    %2689 = vmatprep.subr.bf16.mxu0 0
    %2690 = vmatpush2.bf16.msra.mxu0 %v2650
    %2691 = vmatprep.subr.bf16.mxu0 0
    %2692 = vmatpush2.bf16.msra.mxu0 %v2649
    %2693 = vmatprep.subr.bf16.mxu0 0
    %2694 = vmatpush2.bf16.msra.mxu0 %v2648
    %2695 = vmatprep.subr.bf16.mxu0 0
    %2696 = vmatpush2.bf16.msra.mxu0 %v2647
    %2697 = vmatprep.subr.bf16.mxu0 0
    %2698 = vmatpush2.bf16.msra.mxu0 %v2646
    %2699 = vmatprep.subr.bf16.mxu0 0
    %2700 = vmatpush2.bf16.msra.mxu0 %v2645
    %2701 = vmatprep.mubr.bf16.mxu0 %v2533
    %2702 = vmatmul.mubr.bf16.gmra.mxu0 %v2532
    %v2703 = vpop.f32.mrf.mxu0
    %v2704 = vadd.f32 %v2571, %v2703
    %v2705 = vpop.f32.mrf.mxu0
    %v2706 = vpop.f32.mrf.mxu0
    %v2707 = vpop.f32.mrf.mxu0
    %2708 = vdwg.mxu0
    %2709 = vst [vmem:[#allocation13] sm:$0xff] %v2704
    // Predicated region
    $region58: #{tpu_custom_call.1} parent=1 // pred_check
      _
    $region59: #{tpu_custom_call.1} parent=1 // pred_check_branch
      %2711 = sbr.rel (0) target = $region61
    $region60: #{tpu_custom_call.1} parent=1 // pred_region
      %s2713 = ssub.s32 128, 128
      %2714 = vsyncadd [#allocation4], %s2713
      %s2716 = sshll.u32 [#allocation13], 4
      %s2717 = int_to_ptr.vmem [resolvable:$true] %s2716
      %2719 = dma.vmem_to_hbm [thread:$0]  %s2717, 128, %s8, [#allocation4]
    $region61: #{tpu_custom_call.1} parent=1 // pred_fallthru
      _
    // Predicated region
    $region62: #{tpu_custom_call.1} parent=1 // pred_check
      _
    $region63: #{tpu_custom_call.1} parent=1 // pred_check_branch
      %2721 = sbr.rel (0) target = $region65
    $region64: #{tpu_custom_call.1} parent=1 // pred_region
      %2722 = dma.done [#allocation4], 128
    $region65: #{tpu_custom_call.1} parent=1 // pred_fallthru
      _
    %2723 = vsyncpa [#allocation3], 1
    %2724 = vsyncpa [#allocation6], 1
    %2725 = vsyncpa [#allocation9], 1
    %2726 = vsyncpa [#allocation12], 1
    %2727 = vsyncpa [#allocation4], 1

</llo_original>
